<compile_context>
chip_gen: v5e
topology: v5e:2x2
jax: 0.10.0
libtpu: 0.0.40
codegen_flags: <defaults>
</compile_context>

<pallas_src>
import jax
import jax.numpy as jnp
from jax.experimental import pallas as pl
from jax.experimental.pallas import tpu as pltpu

EPS = 1e-5


def _round_up(x, m):
    return ((x + m - 1) // m) * m


def _make_block_kernel(N, L, CP):
    """Fused ResNetBlock kernel body (static shapes, channels padded to CP)."""
    NL = N * L
    inv_cnt = 1.0 / float(NL)
    DN = (((1,), (0,)), ((), ()))          # (rows, C) @ (C, CP) contraction

    def kernel(xcol_ref, wxcol_ref, wscol_ref, wy_ref, wz_ref,
               gx_ref, bex_ref, gs_ref, bes_ref,
               gy_ref, bey_ref, gz_ref, bez_ref, out_ref):
        # Local position of every flattened row inside its batch element
        # (lane-dense int32 constant; reshape is a tile-layout no-op).
        lpos = jax.lax.broadcasted_iota(jnp.int32, (N, L, CP), 1).reshape(NL, CP)
        ones8 = jnp.ones((8, NL), jnp.float32)   # MXU row-reduction operand

        def bn(y, g_ref, be_ref, relu):
            # Training-mode BatchNorm1d over (N, L); column sums on the MXU.
            s1 = jax.lax.dot_general(ones8, y, DN,
                                     preferred_element_type=jnp.float32)[0:1, :]
            s2 = jax.lax.dot_general(ones8, y * y, DN,
                                     preferred_element_type=jnp.float32)[0:1, :]
            mean = s1 * inv_cnt
            var = jnp.maximum(s2 * inv_cnt - mean * mean, 0.0)   # clamp one-pass var
            scale = g_ref[...] * jax.lax.rsqrt(var + EPS)
            shift = be_ref[...] - mean * scale
            out = y * scale + shift
            return jnp.maximum(out, 0.0) if relu else out

        def conv_shifted(act, w_ref, K):
            # act: (NL, CP) f32.  Taps via roll on the flattened row axis; the
            # cross-batch wrap is exactly the halo, zeroed by the mask before
            # feeding the MXU in bf16.
            half = K // 2
            acc = None
            for k in range(K):
                off = k - half
                if off == 0:
                    tap = act.astype(jnp.bfloat16)
                else:
                    rolled = pltpu.roll(act, shift=(-off) % NL, axis=0)
                    valid = (lpos < L - off) if off > 0 else (lpos >= -off)
                    tap = (rolled * valid.astype(jnp.float32)).astype(jnp.bfloat16)
                t = jax.lax.dot_general(tap, w_ref[k], DN,
                                        preferred_element_type=jnp.float32)
                acc = t if acc is None else acc + t
            return acc

        xcol = xcol_ref[...]                     # (NL, ColP) bf16, read once
        # ---- stage 1: conv_x as one depth-(7*Cin) matmul + BN + ReLU --------
        y1 = jax.lax.dot_general(xcol, wxcol_ref[...], DN,
                                 preferred_element_type=jnp.float32)
        out1 = bn(y1, gx_ref, bex_ref, relu=True)
        # ---- shortcut: 1x1 conv embedded at the central-tap rows of xcol ----
        ysc = jax.lax.dot_general(xcol, wscol_ref[...], DN,
                                  preferred_element_type=jnp.float32)
        short = bn(ysc, gs_ref, bes_ref, relu=False)
        # ---- stage 2: conv_y (K=5) + BN + ReLU ------------------------------
        out2 = bn(conv_shifted(out1, wy_ref, 5), gy_ref, bey_ref, relu=True)
        # ---- stage 3: conv_z (K=3) + BN + residual + ReLU -------------------
        y3 = bn(conv_shifted(out2, wz_ref, 3), gz_ref, bez_ref, relu=False)
        out_ref[...] = jnp.maximum(y3 + short, 0.0)

    return kernel


def resnet_block_forward(x_ncl, params):
    """x_ncl: (N, C_in, L) like the PyTorch module. Returns (N, C_out, L)."""
    N, Cin, L = x_ncl.shape
    Cout = params["gx"].shape[0]
    CP = _round_up(Cout, 128)                    # lane-dense channel count
    ColP = _round_up(7 * Cin, 128)               # lane-dense im2col depth
    NL = N * L

    # TODO(synk): when chaining several ResNet blocks keep activations in NLC
    # across blocks so this transpose (and the output one) disappears.
    x = jnp.transpose(x_ncl, (0, 2, 1)).astype(jnp.float32)     # NCL -> NLC
    xp = jnp.pad(x, ((0, 0), (3, 3), (0, 0)))                   # pad once, halo 3
    xcol = jnp.concatenate([xp[:, k:k + L, :] for k in range(7)], axis=-1)
    xcol = xcol.reshape(NL, 7 * Cin)
    xcol = jnp.pad(xcol, ((0, 0), (0, ColP - 7 * Cin))).astype(jnp.bfloat16)

    # conv_x weights (7, Cin, Cout) -> (7*Cin, Cout), padded, bf16.
    wxcol = jnp.pad(params["wx"].astype(jnp.float32).reshape(7 * Cin, Cout),
                    ((0, ColP - 7 * Cin), (0, CP - Cout))).astype(jnp.bfloat16)
    # 1x1 shortcut weights embedded at the central-tap rows (k=3) of xcol.
    wscol = jnp.zeros((ColP, CP), jnp.float32).at[
        3 * Cin:4 * Cin, :Cout].set(params["ws"][0].astype(jnp.float32)
                                    ).astype(jnp.bfloat16)

    def pad_w(w):                                # (K, Cout, Cout) -> (K, CP, CP) bf16
        return jnp.pad(w.astype(jnp.float32),
                       ((0, 0), (0, CP - w.shape[1]), (0, CP - w.shape[2]))
                       ).astype(jnp.bfloat16)

    wy, wz = pad_w(params["wy"]), pad_w(params["wz"])

    def pad_vec(v):                              # (Cout,) -> (1, CP) f32
        return jnp.pad(v.astype(jnp.float32).reshape(1, -1),
                       ((0, 0), (0, CP - v.shape[0])))

    gx, bex = pad_vec(params["gx"]), pad_vec(params["betax"])
    gs, bes = pad_vec(params["gs"]), pad_vec(params["betas"])
    gy, bey = pad_vec(params["gy"]), pad_vec(params["betay"])
    gz, bez = pad_vec(params["gz"]), pad_vec(params["betaz"])
    # Conv biases are NOT passed: they cancel exactly under training-mode BN.

    args = [xcol, wxcol, wscol, wy, wz, gx, bex, gs, bes, gy, bey, gz, bez]
    in_specs = [pl.BlockSpec(a.shape, lambda i, nd=a.ndim: (0,) * nd)
                for a in args]

    # VMEM budget derived from actual operand sizes (double-buffered inputs +
    # output + live f32 intermediates) rather than a fixed constant.
    arg_bytes = sum(int(a.size) * a.dtype.itemsize for a in args)
    out_bytes = NL * CP * 4
    live_bytes = 10 * NL * CP * 4
    vmem_limit = int(min(100 * 1024 * 1024,
                         max(16 * 1024 * 1024,
                             2 * (arg_bytes + out_bytes) + live_bytes + (4 << 20))))

    out = pl.pallas_call(
        _make_block_kernel(N, L, CP),
        out_shape=jax.ShapeDtypeStruct((NL, CP), jnp.float32),
        grid=(1,),
        in_specs=in_specs,
        out_specs=pl.BlockSpec((NL, CP), lambda i: (0, 0)),
        compiler_params=pltpu.CompilerParams(
            dimension_semantics=("arbitrary",),
            vmem_limit_bytes=vmem_limit),
    )(*args)

    out = out.reshape(N, L, CP)[:, :, :Cout]     # drop channel pad
    return jnp.transpose(out, (0, 2, 1))         # back to NCL for the module API


def init_params(key, in_channels, out_channels):
    """Deterministic parameter init. Conv weights stored as (K, Cin, Cout)."""
    ks = jax.random.split(key, 8)

    def conv_w(k, K, cin, cout):
        return jax.random.normal(k, (K, cin, cout), jnp.float32) * 0.1

    def conv_b(k, cout):
        return jax.random.normal(k, (cout,), jnp.float32) * 0.05

    def bn(k, cout):
        g = 1.0 + jax.random.normal(k, (cout,), jnp.float32) * 0.05
        be = jax.random.normal(jax.random.fold_in(k, 1), (cout,), jnp.float32) * 0.05
        return g, be

    gx, betax = bn(ks[4], out_channels)
    gy, betay = bn(ks[5], out_channels)
    gz, betaz = bn(ks[6], out_channels)
    gs, betas = bn(ks[7], out_channels)
    return dict(
        wx=conv_w(ks[0], 7, in_channels, out_channels),
        bx=conv_b(jax.random.fold_in(ks[0], 9), out_channels),
        wy=conv_w(ks[1], 5, out_channels, out_channels),
        by=conv_b(jax.random.fold_in(ks[1], 9), out_channels),
        wz=conv_w(ks[2], 3, out_channels, out_channels),
        bz=conv_b(jax.random.fold_in(ks[2], 9), out_channels),
        ws=conv_w(ks[3], 1, in_channels, out_channels),
        bs=conv_b(jax.random.fold_in(ks[3], 9), out_channels),
        gx=gx, betax=betax, gy=gy, betay=betay,
        gz=gz, betaz=betaz, gs=gs, betas=betas,
    )


# ---------------- pure-JAX f32 reference (mirrors the PyTorch module) ----------------
def _ref_conv_bn(x, w, b, g, be, relu, residual=None):
    K, cin, cout = w.shape
    N, L, _ = x.shape
    pad = (K - 1) // 2
    xp = jnp.pad(x, ((0, 0), (pad, pad), (0, 0)))
    acc = jnp.zeros((N * L, cout), jnp.float32)
    for k in range(K):
        acc = acc + xp[:, k:k + L, :].reshape(N * L, cin) @ w[k]
    y = acc + b.reshape(1, cout)
    mean = jnp.mean(y, axis=0, keepdims=True)
    var = jnp.mean((y - mean) ** 2, axis=0, keepdims=True)
    out = (y - mean) * jax.lax.rsqrt(var + EPS) * g.reshape(1, cout) + be.reshape(1, cout)
    if residual is not None:
        out = out + residual.reshape(N * L, cout)
    if relu:
        out = jnp.maximum(out, 0.0)
    return out.reshape(N, L, cout)


def _ref_forward(x_ncl, p):
    x = jnp.transpose(x_ncl, (0, 2, 1)).astype(jnp.float32)
    out = _ref_conv_bn(x, p["wx"], p["bx"], p["gx"], p["betax"], True)
    out = _ref_conv_bn(out, p["wy"], p["by"], p["gy"], p["betay"], True)
    short = _ref_conv_bn(x, p["ws"], p["bs"], p["gs"], p["betas"], False)
    out = _ref_conv_bn(out, p["wz"], p["bz"], p["gz"], p["betaz"], True, residual=short)
    return jnp.transpose(out, (0, 2, 1))


if __name__ == "__main__":
    key = jax.random.PRNGKey(0)
    k_x, k_p = jax.random.split(key)

    N, C_IN, C_OUT, L = 2, 4, 8, 16
    x = jax.random.normal(k_x, (N, C_IN, L), jnp.float32)     # PyTorch NCL input
    params = init_params(k_p, C_IN, C_OUT)

    fwd = jax.jit(resnet_block_forward)
    out = jax.block_until_ready(fwd(x, params))
    assert out.shape == (N, C_OUT, L), out.shape

    ref = jax.block_until_ready(_ref_forward(x, params))
    # Kernel feeds the MXU bf16 operands (f32 accumulation) and folds the conv
    # bias into training-mode BN, so it is algebraically equivalent but not
    # bit-identical to the f32 reference; tolerance loosened accordingly.
    assert jnp.allclose(out, ref, rtol=5e-2, atol=5e-2), "mismatch vs pure-JAX reference"

    print("KERNEL_OK")
</pallas_src>

<mosaic_0001>
module attributes {stable_mosaic.version = 11 : i64} {
  func.func @kernel(%arg0: i32, %arg1: memref<32x128xbf16, #tpu.memory_space<vmem>>, %arg2: memref<128x128xbf16, #tpu.memory_space<vmem>>, %arg3: memref<128x128xbf16, #tpu.memory_space<vmem>>, %arg4: memref<5x128x128xbf16, #tpu.memory_space<vmem>>, %arg5: memref<3x128x128xbf16, #tpu.memory_space<vmem>>, %arg6: memref<1x128xf32, #tpu.memory_space<vmem>>, %arg7: memref<1x128xf32, #tpu.memory_space<vmem>>, %arg8: memref<1x128xf32, #tpu.memory_space<vmem>>, %arg9: memref<1x128xf32, #tpu.memory_space<vmem>>, %arg10: memref<1x128xf32, #tpu.memory_space<vmem>>, %arg11: memref<1x128xf32, #tpu.memory_space<vmem>>, %arg12: memref<1x128xf32, #tpu.memory_space<vmem>>, %arg13: memref<1x128xf32, #tpu.memory_space<vmem>>, %arg14: memref<32x128xf32, #tpu.memory_space<vmem>>) attributes {dimension_semantics = [#tpu.dimension_semantics<arbitrary>], iteration_bounds = array<i64: 1>, scalar_prefetch = 0 : i64, scratch_operands = 0 : i64, tpu.core_type = #tpu.core_type<tc>, window_params = [{pipeline_mode = #tpu.pipeline_mode<synchronous>, transform_indices = @transform_0, window_bounds = array<i64: 32, 128>}, {pipeline_mode = #tpu.pipeline_mode<synchronous>, transform_indices = @transform_1, window_bounds = array<i64: 128, 128>}, {pipeline_mode = #tpu.pipeline_mode<synchronous>, transform_indices = @transform_2, window_bounds = array<i64: 128, 128>}, {pipeline_mode = #tpu.pipeline_mode<synchronous>, transform_indices = @transform_3, window_bounds = array<i64: 5, 128, 128>}, {pipeline_mode = #tpu.pipeline_mode<synchronous>, transform_indices = @transform_4, window_bounds = array<i64: 3, 128, 128>}, {pipeline_mode = #tpu.pipeline_mode<synchronous>, transform_indices = @transform_5, window_bounds = array<i64: 1, 128>}, {pipeline_mode = #tpu.pipeline_mode<synchronous>, transform_indices = @transform_6, window_bounds = array<i64: 1, 128>}, {pipeline_mode = #tpu.pipeline_mode<synchronous>, transform_indices = @transform_7, window_bounds = array<i64: 1, 128>}, {pipeline_mode = #tpu.pipeline_mode<synchronous>, transform_indices = @transform_8, window_bounds = array<i64: 1, 128>}, {pipeline_mode = #tpu.pipeline_mode<synchronous>, transform_indices = @transform_9, window_bounds = array<i64: 1, 128>}, {pipeline_mode = #tpu.pipeline_mode<synchronous>, transform_indices = @transform_10, window_bounds = array<i64: 1, 128>}, {pipeline_mode = #tpu.pipeline_mode<synchronous>, transform_indices = @transform_11, window_bounds = array<i64: 1, 128>}, {pipeline_mode = #tpu.pipeline_mode<synchronous>, transform_indices = @transform_12, window_bounds = array<i64: 1, 128>}, {pipeline_mode = #tpu.pipeline_mode<synchronous>, transform_indices = @transform_13, window_bounds = array<i64: 32, 128>}]} {
    %0 = tpu.iota {dimensions = array<i32: 1>} : vector<2x16x128xi32>
    %1 = vector.shape_cast %0 : vector<2x16x128xi32> to vector<32x128xi32>
    %cst = arith.constant 1.000000e+00 : f32
    %2 = vector.broadcast %cst : f32 to vector<8x32xf32>
    %c0 = arith.constant 0 : index
    %c0_0 = arith.constant 0 : index
    %3 = vector.load %arg1[%c0, %c0_0] : memref<32x128xbf16, #tpu.memory_space<vmem>>, vector<32x128xbf16>
    %c0_1 = arith.constant 0 : index
    %c0_2 = arith.constant 0 : index
    %4 = vector.load %arg2[%c0_1, %c0_2] : memref<128x128xbf16, #tpu.memory_space<vmem>>, vector<128x128xbf16>
    %cst_3 = arith.constant dense<0.000000e+00> : vector<32x128xf32>
    %5 = tpu.matmul %3, %4, %cst_3 {dimension_numbers = #tpu.dot_dimension_numbers<[1], [0], [0], [1], [0, 0, 1, 1], [], []>} : vector<32x128xbf16>, vector<128x128xbf16>, vector<32x128xf32> -> vector<32x128xf32>
    %cst_4 = arith.constant dense<0.000000e+00> : vector<8x128xf32>
    %6 = tpu.matmul %2, %5, %cst_4 {dimension_numbers = #tpu.dot_dimension_numbers<[1], [0], [0], [1], [0, 0, 1, 1], [], []>} : vector<8x32xf32>, vector<32x128xf32>, vector<8x128xf32> -> vector<8x128xf32>
    %7 = vector.extract_strided_slice %6 {offsets = [0, 0], sizes = [1, 128], strides = [1, 1]} : vector<8x128xf32> to vector<1x128xf32>
    %8 = arith.mulf %5, %5 : vector<32x128xf32>
    %cst_5 = arith.constant dense<0.000000e+00> : vector<8x128xf32>
    %9 = tpu.matmul %2, %8, %cst_5 {dimension_numbers = #tpu.dot_dimension_numbers<[1], [0], [0], [1], [0, 0, 1, 1], [], []>} : vector<8x32xf32>, vector<32x128xf32>, vector<8x128xf32> -> vector<8x128xf32>
    %10 = vector.extract_strided_slice %9 {offsets = [0, 0], sizes = [1, 128], strides = [1, 1]} : vector<8x128xf32> to vector<1x128xf32>
    %cst_6 = arith.constant 3.125000e-02 : f32
    %11 = vector.broadcast %cst_6 : f32 to vector<1x128xf32>
    %12 = arith.mulf %7, %11 : vector<1x128xf32>
    %cst_7 = arith.constant 3.125000e-02 : f32
    %13 = vector.broadcast %cst_7 : f32 to vector<1x128xf32>
    %14 = arith.mulf %10, %13 : vector<1x128xf32>
    %15 = arith.mulf %12, %12 : vector<1x128xf32>
    %16 = arith.subf %14, %15 : vector<1x128xf32>
    %cst_8 = arith.constant 0.000000e+00 : f32
    %17 = vector.broadcast %cst_8 : f32 to vector<1x128xf32>
    %18 = arith.maximumf %16, %17 : vector<1x128xf32>
    %c0_9 = arith.constant 0 : index
    %c0_10 = arith.constant 0 : index
    %19 = vector.load %arg6[%c0_9, %c0_10] : memref<1x128xf32, #tpu.memory_space<vmem>>, vector<1x128xf32>
    %cst_11 = arith.constant 9.99999974E-6 : f32
    %20 = vector.broadcast %cst_11 : f32 to vector<1x128xf32>
    %21 = arith.addf %18, %20 : vector<1x128xf32>
    %22 = math.rsqrt %21 : vector<1x128xf32>
    %23 = arith.mulf %19, %22 : vector<1x128xf32>
    %c0_12 = arith.constant 0 : index
    %c0_13 = arith.constant 0 : index
    %24 = vector.load %arg7[%c0_12, %c0_13] : memref<1x128xf32, #tpu.memory_space<vmem>>, vector<1x128xf32>
    %25 = arith.mulf %12, %23 : vector<1x128xf32>
    %26 = arith.subf %24, %25 : vector<1x128xf32>
    %27 = vector.broadcast %23 : vector<1x128xf32> to vector<32x128xf32>
    %28 = arith.mulf %5, %27 : vector<32x128xf32>
    %29 = vector.broadcast %26 : vector<1x128xf32> to vector<32x128xf32>
    %30 = arith.addf %28, %29 : vector<32x128xf32>
    %cst_14 = arith.constant 0.000000e+00 : f32
    %31 = vector.broadcast %cst_14 : f32 to vector<32x128xf32>
    %32 = arith.maximumf %30, %31 : vector<32x128xf32>
    %c0_15 = arith.constant 0 : index
    %c0_16 = arith.constant 0 : index
    %33 = vector.load %arg3[%c0_15, %c0_16] : memref<128x128xbf16, #tpu.memory_space<vmem>>, vector<128x128xbf16>
    %cst_17 = arith.constant dense<0.000000e+00> : vector<32x128xf32>
    %34 = tpu.matmul %3, %33, %cst_17 {dimension_numbers = #tpu.dot_dimension_numbers<[1], [0], [0], [1], [0, 0, 1, 1], [], []>} : vector<32x128xbf16>, vector<128x128xbf16>, vector<32x128xf32> -> vector<32x128xf32>
    %cst_18 = arith.constant dense<0.000000e+00> : vector<8x128xf32>
    %35 = tpu.matmul %2, %34, %cst_18 {dimension_numbers = #tpu.dot_dimension_numbers<[1], [0], [0], [1], [0, 0, 1, 1], [], []>} : vector<8x32xf32>, vector<32x128xf32>, vector<8x128xf32> -> vector<8x128xf32>
    %36 = vector.extract_strided_slice %35 {offsets = [0, 0], sizes = [1, 128], strides = [1, 1]} : vector<8x128xf32> to vector<1x128xf32>
    %37 = arith.mulf %34, %34 : vector<32x128xf32>
    %cst_19 = arith.constant dense<0.000000e+00> : vector<8x128xf32>
    %38 = tpu.matmul %2, %37, %cst_19 {dimension_numbers = #tpu.dot_dimension_numbers<[1], [0], [0], [1], [0, 0, 1, 1], [], []>} : vector<8x32xf32>, vector<32x128xf32>, vector<8x128xf32> -> vector<8x128xf32>
    %39 = vector.extract_strided_slice %38 {offsets = [0, 0], sizes = [1, 128], strides = [1, 1]} : vector<8x128xf32> to vector<1x128xf32>
    %cst_20 = arith.constant 3.125000e-02 : f32
    %40 = vector.broadcast %cst_20 : f32 to vector<1x128xf32>
    %41 = arith.mulf %36, %40 : vector<1x128xf32>
    %cst_21 = arith.constant 3.125000e-02 : f32
    %42 = vector.broadcast %cst_21 : f32 to vector<1x128xf32>
    %43 = arith.mulf %39, %42 : vector<1x128xf32>
    %44 = arith.mulf %41, %41 : vector<1x128xf32>
    %45 = arith.subf %43, %44 : vector<1x128xf32>
    %cst_22 = arith.constant 0.000000e+00 : f32
    %46 = vector.broadcast %cst_22 : f32 to vector<1x128xf32>
    %47 = arith.maximumf %45, %46 : vector<1x128xf32>
    %c0_23 = arith.constant 0 : index
    %c0_24 = arith.constant 0 : index
    %48 = vector.load %arg8[%c0_23, %c0_24] : memref<1x128xf32, #tpu.memory_space<vmem>>, vector<1x128xf32>
    %cst_25 = arith.constant 9.99999974E-6 : f32
    %49 = vector.broadcast %cst_25 : f32 to vector<1x128xf32>
    %50 = arith.addf %47, %49 : vector<1x128xf32>
    %51 = math.rsqrt %50 : vector<1x128xf32>
    %52 = arith.mulf %48, %51 : vector<1x128xf32>
    %c0_26 = arith.constant 0 : index
    %c0_27 = arith.constant 0 : index
    %53 = vector.load %arg9[%c0_26, %c0_27] : memref<1x128xf32, #tpu.memory_space<vmem>>, vector<1x128xf32>
    %54 = arith.mulf %41, %52 : vector<1x128xf32>
    %55 = arith.subf %53, %54 : vector<1x128xf32>
    %56 = vector.broadcast %52 : vector<1x128xf32> to vector<32x128xf32>
    %57 = arith.mulf %34, %56 : vector<32x128xf32>
    %58 = vector.broadcast %55 : vector<1x128xf32> to vector<32x128xf32>
    %59 = arith.addf %57, %58 : vector<32x128xf32>
    %c2_i32 = arith.constant 2 : i32
    %60 = tpu.dynamic_rotate %32 by %c2_i32 dim 0 : vector<32x128xf32>, i32 -> vector<32x128xf32>
    %c2_i32_28 = arith.constant 2 : i32
    %61 = vector.broadcast %c2_i32_28 : i32 to vector<32x128xi32>
    %62 = arith.cmpi sge, %1, %61 : vector<32x128xi32>
    %63 = arith.extui %62 : vector<32x128xi1> to vector<32x128xi32>
    %64 = arith.sitofp %63 : vector<32x128xi32> to vector<32x128xf32>
    %65 = arith.mulf %60, %64 : vector<32x128xf32>
    %66 = arith.truncf %65 : vector<32x128xf32> to vector<32x128xbf16>
    %c0_29 = arith.constant 0 : index
    %c0_30 = arith.constant 0 : index
    %c0_31 = arith.constant 0 : index
    %67 = vector.load %arg4[%c0_29, %c0_30, %c0_31] : memref<5x128x128xbf16, #tpu.memory_space<vmem>>, vector<1x128x128xbf16>
    %68 = vector.shape_cast %67 : vector<1x128x128xbf16> to vector<128x128xbf16>
    %cst_32 = arith.constant dense<0.000000e+00> : vector<32x128xf32>
    %69 = tpu.matmul %66, %68, %cst_32 {dimension_numbers = #tpu.dot_dimension_numbers<[1], [0], [0], [1], [0, 0, 1, 1], [], []>} : vector<32x128xbf16>, vector<128x128xbf16>, vector<32x128xf32> -> vector<32x128xf32>
    %c1_i32 = arith.constant 1 : i32
    %70 = tpu.dynamic_rotate %32 by %c1_i32 dim 0 : vector<32x128xf32>, i32 -> vector<32x128xf32>
    %c1_i32_33 = arith.constant 1 : i32
    %71 = vector.broadcast %c1_i32_33 : i32 to vector<32x128xi32>
    %72 = arith.cmpi sge, %1, %71 : vector<32x128xi32>
    %73 = arith.extui %72 : vector<32x128xi1> to vector<32x128xi32>
    %74 = arith.sitofp %73 : vector<32x128xi32> to vector<32x128xf32>
    %75 = arith.mulf %70, %74 : vector<32x128xf32>
    %76 = arith.truncf %75 : vector<32x128xf32> to vector<32x128xbf16>
    %c1 = arith.constant 1 : index
    %c0_34 = arith.constant 0 : index
    %c0_35 = arith.constant 0 : index
    %77 = vector.load %arg4[%c1, %c0_34, %c0_35] : memref<5x128x128xbf16, #tpu.memory_space<vmem>>, vector<1x128x128xbf16>
    %78 = vector.shape_cast %77 : vector<1x128x128xbf16> to vector<128x128xbf16>
    %cst_36 = arith.constant dense<0.000000e+00> : vector<32x128xf32>
    %79 = tpu.matmul %76, %78, %cst_36 {dimension_numbers = #tpu.dot_dimension_numbers<[1], [0], [0], [1], [0, 0, 1, 1], [], []>} : vector<32x128xbf16>, vector<128x128xbf16>, vector<32x128xf32> -> vector<32x128xf32>
    %80 = arith.addf %69, %79 : vector<32x128xf32>
    %81 = arith.truncf %32 : vector<32x128xf32> to vector<32x128xbf16>
    %c2 = arith.constant 2 : index
    %c0_37 = arith.constant 0 : index
    %c0_38 = arith.constant 0 : index
    %82 = vector.load %arg4[%c2, %c0_37, %c0_38] : memref<5x128x128xbf16, #tpu.memory_space<vmem>>, vector<1x128x128xbf16>
    %83 = vector.shape_cast %82 : vector<1x128x128xbf16> to vector<128x128xbf16>
    %cst_39 = arith.constant dense<0.000000e+00> : vector<32x128xf32>
    %84 = tpu.matmul %81, %83, %cst_39 {dimension_numbers = #tpu.dot_dimension_numbers<[1], [0], [0], [1], [0, 0, 1, 1], [], []>} : vector<32x128xbf16>, vector<128x128xbf16>, vector<32x128xf32> -> vector<32x128xf32>
    %85 = arith.addf %80, %84 : vector<32x128xf32>
    %c31_i32 = arith.constant 31 : i32
    %86 = tpu.dynamic_rotate %32 by %c31_i32 dim 0 : vector<32x128xf32>, i32 -> vector<32x128xf32>
    %c15_i32 = arith.constant 15 : i32
    %87 = vector.broadcast %c15_i32 : i32 to vector<32x128xi32>
    %88 = arith.cmpi slt, %1, %87 : vector<32x128xi32>
    %89 = arith.extui %88 : vector<32x128xi1> to vector<32x128xi32>
    %90 = arith.sitofp %89 : vector<32x128xi32> to vector<32x128xf32>
    %91 = arith.mulf %86, %90 : vector<32x128xf32>
    %92 = arith.truncf %91 : vector<32x128xf32> to vector<32x128xbf16>
    %c3 = arith.constant 3 : index
    %c0_40 = arith.constant 0 : index
    %c0_41 = arith.constant 0 : index
    %93 = vector.load %arg4[%c3, %c0_40, %c0_41] : memref<5x128x128xbf16, #tpu.memory_space<vmem>>, vector<1x128x128xbf16>
    %94 = vector.shape_cast %93 : vector<1x128x128xbf16> to vector<128x128xbf16>
    %cst_42 = arith.constant dense<0.000000e+00> : vector<32x128xf32>
    %95 = tpu.matmul %92, %94, %cst_42 {dimension_numbers = #tpu.dot_dimension_numbers<[1], [0], [0], [1], [0, 0, 1, 1], [], []>} : vector<32x128xbf16>, vector<128x128xbf16>, vector<32x128xf32> -> vector<32x128xf32>
    %96 = arith.addf %85, %95 : vector<32x128xf32>
    %c30_i32 = arith.constant 30 : i32
    %97 = tpu.dynamic_rotate %32 by %c30_i32 dim 0 : vector<32x128xf32>, i32 -> vector<32x128xf32>
    %c14_i32 = arith.constant 14 : i32
    %98 = vector.broadcast %c14_i32 : i32 to vector<32x128xi32>
    %99 = arith.cmpi slt, %1, %98 : vector<32x128xi32>
    %100 = arith.extui %99 : vector<32x128xi1> to vector<32x128xi32>
    %101 = arith.sitofp %100 : vector<32x128xi32> to vector<32x128xf32>
    %102 = arith.mulf %97, %101 : vector<32x128xf32>
    %103 = arith.truncf %102 : vector<32x128xf32> to vector<32x128xbf16>
    %c4 = arith.constant 4 : index
    %c0_43 = arith.constant 0 : index
    %c0_44 = arith.constant 0 : index
    %104 = vector.load %arg4[%c4, %c0_43, %c0_44] : memref<5x128x128xbf16, #tpu.memory_space<vmem>>, vector<1x128x128xbf16>
    %105 = vector.shape_cast %104 : vector<1x128x128xbf16> to vector<128x128xbf16>
    %cst_45 = arith.constant dense<0.000000e+00> : vector<32x128xf32>
    %106 = tpu.matmul %103, %105, %cst_45 {dimension_numbers = #tpu.dot_dimension_numbers<[1], [0], [0], [1], [0, 0, 1, 1], [], []>} : vector<32x128xbf16>, vector<128x128xbf16>, vector<32x128xf32> -> vector<32x128xf32>
    %107 = arith.addf %96, %106 : vector<32x128xf32>
    %cst_46 = arith.constant dense<0.000000e+00> : vector<8x128xf32>
    %108 = tpu.matmul %2, %107, %cst_46 {dimension_numbers = #tpu.dot_dimension_numbers<[1], [0], [0], [1], [0, 0, 1, 1], [], []>} : vector<8x32xf32>, vector<32x128xf32>, vector<8x128xf32> -> vector<8x128xf32>
    %109 = vector.extract_strided_slice %108 {offsets = [0, 0], sizes = [1, 128], strides = [1, 1]} : vector<8x128xf32> to vector<1x128xf32>
    %110 = arith.mulf %107, %107 : vector<32x128xf32>
    %cst_47 = arith.constant dense<0.000000e+00> : vector<8x128xf32>
    %111 = tpu.matmul %2, %110, %cst_47 {dimension_numbers = #tpu.dot_dimension_numbers<[1], [0], [0], [1], [0, 0, 1, 1], [], []>} : vector<8x32xf32>, vector<32x128xf32>, vector<8x128xf32> -> vector<8x128xf32>
    %112 = vector.extract_strided_slice %111 {offsets = [0, 0], sizes = [1, 128], strides = [1, 1]} : vector<8x128xf32> to vector<1x128xf32>
    %cst_48 = arith.constant 3.125000e-02 : f32
    %113 = vector.broadcast %cst_48 : f32 to vector<1x128xf32>
    %114 = arith.mulf %109, %113 : vector<1x128xf32>
    %cst_49 = arith.constant 3.125000e-02 : f32
    %115 = vector.broadcast %cst_49 : f32 to vector<1x128xf32>
    %116 = arith.mulf %112, %115 : vector<1x128xf32>
    %117 = arith.mulf %114, %114 : vector<1x128xf32>
    %118 = arith.subf %116, %117 : vector<1x128xf32>
    %cst_50 = arith.constant 0.000000e+00 : f32
    %119 = vector.broadcast %cst_50 : f32 to vector<1x128xf32>
    %120 = arith.maximumf %118, %119 : vector<1x128xf32>
    %c0_51 = arith.constant 0 : index
    %c0_52 = arith.constant 0 : index
    %121 = vector.load %arg10[%c0_51, %c0_52] : memref<1x128xf32, #tpu.memory_space<vmem>>, vector<1x128xf32>
    %cst_53 = arith.constant 9.99999974E-6 : f32
    %122 = vector.broadcast %cst_53 : f32 to vector<1x128xf32>
    %123 = arith.addf %120, %122 : vector<1x128xf32>
    %124 = math.rsqrt %123 : vector<1x128xf32>
    %125 = arith.mulf %121, %124 : vector<1x128xf32>
    %c0_54 = arith.constant 0 : index
    %c0_55 = arith.constant 0 : index
    %126 = vector.load %arg11[%c0_54, %c0_55] : memref<1x128xf32, #tpu.memory_space<vmem>>, vector<1x128xf32>
    %127 = arith.mulf %114, %125 : vector<1x128xf32>
    %128 = arith.subf %126, %127 : vector<1x128xf32>
    %129 = vector.broadcast %125 : vector<1x128xf32> to vector<32x128xf32>
    %130 = arith.mulf %107, %129 : vector<32x128xf32>
    %131 = vector.broadcast %128 : vector<1x128xf32> to vector<32x128xf32>
    %132 = arith.addf %130, %131 : vector<32x128xf32>
    %cst_56 = arith.constant 0.000000e+00 : f32
    %133 = vector.broadcast %cst_56 : f32 to vector<32x128xf32>
    %134 = arith.maximumf %132, %133 : vector<32x128xf32>
    %c1_i32_57 = arith.constant 1 : i32
    %135 = tpu.dynamic_rotate %134 by %c1_i32_57 dim 0 : vector<32x128xf32>, i32 -> vector<32x128xf32>
    %c1_i32_58 = arith.constant 1 : i32
    %136 = vector.broadcast %c1_i32_58 : i32 to vector<32x128xi32>
    %137 = arith.cmpi sge, %1, %136 : vector<32x128xi32>
    %138 = arith.extui %137 : vector<32x128xi1> to vector<32x128xi32>
    %139 = arith.sitofp %138 : vector<32x128xi32> to vector<32x128xf32>
    %140 = arith.mulf %135, %139 : vector<32x128xf32>
    %141 = arith.truncf %140 : vector<32x128xf32> to vector<32x128xbf16>
    %c0_59 = arith.constant 0 : index
    %c0_60 = arith.constant 0 : index
    %c0_61 = arith.constant 0 : index
    %142 = vector.load %arg5[%c0_59, %c0_60, %c0_61] : memref<3x128x128xbf16, #tpu.memory_space<vmem>>, vector<1x128x128xbf16>
    %143 = vector.shape_cast %142 : vector<1x128x128xbf16> to vector<128x128xbf16>
    %cst_62 = arith.constant dense<0.000000e+00> : vector<32x128xf32>
    %144 = tpu.matmul %141, %143, %cst_62 {dimension_numbers = #tpu.dot_dimension_numbers<[1], [0], [0], [1], [0, 0, 1, 1], [], []>} : vector<32x128xbf16>, vector<128x128xbf16>, vector<32x128xf32> -> vector<32x128xf32>
    %145 = arith.truncf %134 : vector<32x128xf32> to vector<32x128xbf16>
    %c1_63 = arith.constant 1 : index
    %c0_64 = arith.constant 0 : index
    %c0_65 = arith.constant 0 : index
    %146 = vector.load %arg5[%c1_63, %c0_64, %c0_65] : memref<3x128x128xbf16, #tpu.memory_space<vmem>>, vector<1x128x128xbf16>
    %147 = vector.shape_cast %146 : vector<1x128x128xbf16> to vector<128x128xbf16>
    %cst_66 = arith.constant dense<0.000000e+00> : vector<32x128xf32>
    %148 = tpu.matmul %145, %147, %cst_66 {dimension_numbers = #tpu.dot_dimension_numbers<[1], [0], [0], [1], [0, 0, 1, 1], [], []>} : vector<32x128xbf16>, vector<128x128xbf16>, vector<32x128xf32> -> vector<32x128xf32>
    %149 = arith.addf %144, %148 : vector<32x128xf32>
    %c31_i32_67 = arith.constant 31 : i32
    %150 = tpu.dynamic_rotate %134 by %c31_i32_67 dim 0 : vector<32x128xf32>, i32 -> vector<32x128xf32>
    %c15_i32_68 = arith.constant 15 : i32
    %151 = vector.broadcast %c15_i32_68 : i32 to vector<32x128xi32>
    %152 = arith.cmpi slt, %1, %151 : vector<32x128xi32>
    %153 = arith.extui %152 : vector<32x128xi1> to vector<32x128xi32>
    %154 = arith.sitofp %153 : vector<32x128xi32> to vector<32x128xf32>
    %155 = arith.mulf %150, %154 : vector<32x128xf32>
    %156 = arith.truncf %155 : vector<32x128xf32> to vector<32x128xbf16>
    %c2_69 = arith.constant 2 : index
    %c0_70 = arith.constant 0 : index
    %c0_71 = arith.constant 0 : index
    %157 = vector.load %arg5[%c2_69, %c0_70, %c0_71] : memref<3x128x128xbf16, #tpu.memory_space<vmem>>, vector<1x128x128xbf16>
    %158 = vector.shape_cast %157 : vector<1x128x128xbf16> to vector<128x128xbf16>
    %cst_72 = arith.constant dense<0.000000e+00> : vector<32x128xf32>
    %159 = tpu.matmul %156, %158, %cst_72 {dimension_numbers = #tpu.dot_dimension_numbers<[1], [0], [0], [1], [0, 0, 1, 1], [], []>} : vector<32x128xbf16>, vector<128x128xbf16>, vector<32x128xf32> -> vector<32x128xf32>
    %160 = arith.addf %149, %159 : vector<32x128xf32>
    %cst_73 = arith.constant dense<0.000000e+00> : vector<8x128xf32>
    %161 = tpu.matmul %2, %160, %cst_73 {dimension_numbers = #tpu.dot_dimension_numbers<[1], [0], [0], [1], [0, 0, 1, 1], [], []>} : vector<8x32xf32>, vector<32x128xf32>, vector<8x128xf32> -> vector<8x128xf32>
    %162 = vector.extract_strided_slice %161 {offsets = [0, 0], sizes = [1, 128], strides = [1, 1]} : vector<8x128xf32> to vector<1x128xf32>
    %163 = arith.mulf %160, %160 : vector<32x128xf32>
    %cst_74 = arith.constant dense<0.000000e+00> : vector<8x128xf32>
    %164 = tpu.matmul %2, %163, %cst_74 {dimension_numbers = #tpu.dot_dimension_numbers<[1], [0], [0], [1], [0, 0, 1, 1], [], []>} : vector<8x32xf32>, vector<32x128xf32>, vector<8x128xf32> -> vector<8x128xf32>
    %165 = vector.extract_strided_slice %164 {offsets = [0, 0], sizes = [1, 128], strides = [1, 1]} : vector<8x128xf32> to vector<1x128xf32>
    %cst_75 = arith.constant 3.125000e-02 : f32
    %166 = vector.broadcast %cst_75 : f32 to vector<1x128xf32>
    %167 = arith.mulf %162, %166 : vector<1x128xf32>
    %cst_76 = arith.constant 3.125000e-02 : f32
    %168 = vector.broadcast %cst_76 : f32 to vector<1x128xf32>
    %169 = arith.mulf %165, %168 : vector<1x128xf32>
    %170 = arith.mulf %167, %167 : vector<1x128xf32>
    %171 = arith.subf %169, %170 : vector<1x128xf32>
    %cst_77 = arith.constant 0.000000e+00 : f32
    %172 = vector.broadcast %cst_77 : f32 to vector<1x128xf32>
    %173 = arith.maximumf %171, %172 : vector<1x128xf32>
    %c0_78 = arith.constant 0 : index
    %c0_79 = arith.constant 0 : index
    %174 = vector.load %arg12[%c0_78, %c0_79] : memref<1x128xf32, #tpu.memory_space<vmem>>, vector<1x128xf32>
    %cst_80 = arith.constant 9.99999974E-6 : f32
    %175 = vector.broadcast %cst_80 : f32 to vector<1x128xf32>
    %176 = arith.addf %173, %175 : vector<1x128xf32>
    %177 = math.rsqrt %176 : vector<1x128xf32>
    %178 = arith.mulf %174, %177 : vector<1x128xf32>
    %c0_81 = arith.constant 0 : index
    %c0_82 = arith.constant 0 : index
    %179 = vector.load %arg13[%c0_81, %c0_82] : memref<1x128xf32, #tpu.memory_space<vmem>>, vector<1x128xf32>
    %180 = arith.mulf %167, %178 : vector<1x128xf32>
    %181 = arith.subf %179, %180 : vector<1x128xf32>
    %182 = vector.broadcast %178 : vector<1x128xf32> to vector<32x128xf32>
    %183 = arith.mulf %160, %182 : vector<32x128xf32>
    %184 = vector.broadcast %181 : vector<1x128xf32> to vector<32x128xf32>
    %185 = arith.addf %183, %184 : vector<32x128xf32>
    %186 = arith.addf %185, %59 : vector<32x128xf32>
    %cst_83 = arith.constant 0.000000e+00 : f32
    %187 = vector.broadcast %cst_83 : f32 to vector<32x128xf32>
    %188 = arith.maximumf %186, %187 : vector<32x128xf32>
    %c0_84 = arith.constant 0 : index
    %c0_85 = arith.constant 0 : index
    %189 = vector.load %arg14[%c0_84, %c0_85] : memref<32x128xf32, #tpu.memory_space<vmem>>, vector<32x128xf32>
    tpu.vector_store %arg14[%c0_84, %c0_85], %188 {strides = array<i32>} : memref<32x128xf32, #tpu.memory_space<vmem>>, vector<32x128xf32>,
    return
  }
  func.func @transform_0(%arg0: i32) -> (i32, i32) {
    %c0_i32 = arith.constant 0 : i32
    %c0_i32_0 = arith.constant 0 : i32
    %c0_i32_1 = arith.constant 0 : i32
    return %c0_i32, %c0_i32_0 : i32, i32
  }
  func.func @transform_1(%arg0: i32) -> (i32, i32) {
    %c0_i32 = arith.constant 0 : i32
    %c0_i32_0 = arith.constant 0 : i32
    %c0_i32_1 = arith.constant 0 : i32
    return %c0_i32, %c0_i32_0 : i32, i32
  }
  func.func @transform_2(%arg0: i32) -> (i32, i32) {
    %c0_i32 = arith.constant 0 : i32
    %c0_i32_0 = arith.constant 0 : i32
    %c0_i32_1 = arith.constant 0 : i32
    return %c0_i32, %c0_i32_0 : i32, i32
  }
  func.func @transform_3(%arg0: i32) -> (i32, i32, i32) {
    %c0_i32 = arith.constant 0 : i32
    %c0_i32_0 = arith.constant 0 : i32
    %c0_i32_1 = arith.constant 0 : i32
    %c0_i32_2 = arith.constant 0 : i32
    return %c0_i32, %c0_i32_0, %c0_i32_1 : i32, i32, i32
  }
  func.func @transform_4(%arg0: i32) -> (i32, i32, i32) {
    %c0_i32 = arith.constant 0 : i32
    %c0_i32_0 = arith.constant 0 : i32
    %c0_i32_1 = arith.constant 0 : i32
    %c0_i32_2 = arith.constant 0 : i32
    return %c0_i32, %c0_i32_0, %c0_i32_1 : i32, i32, i32
  }
  func.func @transform_5(%arg0: i32) -> (i32, i32) {
    %c0_i32 = arith.constant 0 : i32
    %c0_i32_0 = arith.constant 0 : i32
    %c0_i32_1 = arith.constant 0 : i32
    return %c0_i32, %c0_i32_0 : i32, i32
  }
  func.func @transform_6(%arg0: i32) -> (i32, i32) {
    %c0_i32 = arith.constant 0 : i32
    %c0_i32_0 = arith.constant 0 : i32
    %c0_i32_1 = arith.constant 0 : i32
    return %c0_i32, %c0_i32_0 : i32, i32
  }
  func.func @transform_7(%arg0: i32) -> (i32, i32) {
    %c0_i32 = arith.constant 0 : i32
    %c0_i32_0 = arith.constant 0 : i32
    %c0_i32_1 = arith.constant 0 : i32
    return %c0_i32, %c0_i32_0 : i32, i32
  }
  func.func @transform_8(%arg0: i32) -> (i32, i32) {
    %c0_i32 = arith.constant 0 : i32
    %c0_i32_0 = arith.constant 0 : i32
    %c0_i32_1 = arith.constant 0 : i32
    return %c0_i32, %c0_i32_0 : i32, i32
  }
  func.func @transform_9(%arg0: i32) -> (i32, i32) {
    %c0_i32 = arith.constant 0 : i32
    %c0_i32_0 = arith.constant 0 : i32
    %c0_i32_1 = arith.constant 0 : i32
    return %c0_i32, %c0_i32_0 : i32, i32
  }
  func.func @transform_10(%arg0: i32) -> (i32, i32) {
    %c0_i32 = arith.constant 0 : i32
    %c0_i32_0 = arith.constant 0 : i32
    %c0_i32_1 = arith.constant 0 : i32
    return %c0_i32, %c0_i32_0 : i32, i32
  }
  func.func @transform_11(%arg0: i32) -> (i32, i32) {
    %c0_i32 = arith.constant 0 : i32
    %c0_i32_0 = arith.constant 0 : i32
    %c0_i32_1 = arith.constant 0 : i32
    return %c0_i32, %c0_i32_0 : i32, i32
  }
  func.func @transform_12(%arg0: i32) -> (i32, i32) {
    %c0_i32 = arith.constant 0 : i32
    %c0_i32_0 = arith.constant 0 : i32
    %c0_i32_1 = arith.constant 0 : i32
    return %c0_i32, %c0_i32_0 : i32, i32
  }
  func.func @transform_13(%arg0: i32) -> (i32, i32) {
    %c0_i32 = arith.constant 0 : i32
    %c0_i32_0 = arith.constant 0 : i32
    %c0_i32_1 = arith.constant 0 : i32
    return %c0_i32, %c0_i32_0 : i32, i32
  }
}

</mosaic_0001>

<llo_original>
// kernel: resnet_block_forward.1
$region0: #{resnet_block_forward.1}
  #allocation0 [shape = 'u32[]', space=smem, size = 0x4, offset = 0x4, fixed_abs, tag = 'smem constant byte address 0x4 - core index']
  #allocation1 [shape = 'u32[72,128]{1,0:T(1,128)}', space=vmem, size = 0x9000, scoped, tag = 'internal scratch']
  %s0 = inlined_call_operand.vmem [shape: bf16[32,128], index: 0, kind: input, shape index: {}]
  %s1 = inlined_call_operand.vmem [shape: bf16[128,128], index: 1, kind: input, shape index: {}]
  %s2 = inlined_call_operand.vmem [shape: bf16[128,128], index: 2, kind: input, shape index: {}]
  %s3 = inlined_call_operand.vmem [shape: bf16[5,128,128], index: 3, kind: input, shape index: {}]
  %s4 = inlined_call_operand.vmem [shape: bf16[3,128,128], index: 4, kind: input, shape index: {}]
  %s5 = inlined_call_operand.vmem [shape: f32[1,128], index: 5, kind: input, shape index: {}]
  %s6 = inlined_call_operand.vmem [shape: f32[1,128], index: 6, kind: input, shape index: {}]
  %s7 = inlined_call_operand.vmem [shape: f32[1,128], index: 7, kind: input, shape index: {}]
  %s8 = inlined_call_operand.vmem [shape: f32[1,128], index: 8, kind: input, shape index: {}]
  %s9 = inlined_call_operand.vmem [shape: f32[1,128], index: 9, kind: input, shape index: {}]
  %s10 = inlined_call_operand.vmem [shape: f32[1,128], index: 10, kind: input, shape index: {}]
  %s11 = inlined_call_operand.vmem [shape: f32[1,128], index: 11, kind: input, shape index: {}]
  %s12 = inlined_call_operand.vmem [shape: f32[1,128], index: 12, kind: input, shape index: {}]
  %s13 = inlined_call_operand.vmem [shape: f32[32,128], index: 13, kind: output, shape index: {}]
  %s14 = sld [smem:[#allocation0]]
  $region62: #{resnet_block_forward.1} parent=0
    _
  %s16 = ssub.s32 1, %s14
  %s17 = scalar_select 0, %s16, %s14
  // Predicated region
  $region2: #{resnet_block_forward.1} parent=0 // pred_check
    _
  $region3: #{resnet_block_forward.1} parent=0 // pred_check_branch
    %19 = sbr.rel (0) target = $region5
  $region4: #{resnet_block_forward.1} parent=0 // pred_region
    _
  $region5: #{resnet_block_forward.1} parent=0 // pred_fallthru
    _
  // Predicated region
  $region6: #{resnet_block_forward.1} parent=0 // pred_check
    _
  $region7: #{resnet_block_forward.1} parent=0 // pred_check_branch
    %21 = sbr.rel (0) target = $region9
  $region8: #{resnet_block_forward.1} parent=0 // pred_region
    _
  $region9: #{resnet_block_forward.1} parent=0 // pred_fallthru
    _
  // Predicated region
  $region10: #{resnet_block_forward.1} parent=0 // pred_check
    _
  $region11: #{resnet_block_forward.1} parent=0 // pred_check_branch
    %23 = sbr.rel (0) target = $region13
  $region12: #{resnet_block_forward.1} parent=0 // pred_region
    _
  $region13: #{resnet_block_forward.1} parent=0 // pred_fallthru
    _
  // Predicated region
  $region14: #{resnet_block_forward.1} parent=0 // pred_check
    _
  $region15: #{resnet_block_forward.1} parent=0 // pred_check_branch
    %25 = sbr.rel (0) target = $region17
  $region16: #{resnet_block_forward.1} parent=0 // pred_region
    _
  $region17: #{resnet_block_forward.1} parent=0 // pred_fallthru
    _
  // Predicated region
  $region18: #{resnet_block_forward.1} parent=0 // pred_check
    _
  $region19: #{resnet_block_forward.1} parent=0 // pred_check_branch
    %27 = sbr.rel (0) target = $region21
  $region20: #{resnet_block_forward.1} parent=0 // pred_region
    _
  $region21: #{resnet_block_forward.1} parent=0 // pred_fallthru
    _
  // Predicated region
  $region22: #{resnet_block_forward.1} parent=0 // pred_check
    _
  $region23: #{resnet_block_forward.1} parent=0 // pred_check_branch
    %29 = sbr.rel (0) target = $region25
  $region24: #{resnet_block_forward.1} parent=0 // pred_region
    _
  $region25: #{resnet_block_forward.1} parent=0 // pred_fallthru
    _
  // Predicated region
  $region26: #{resnet_block_forward.1} parent=0 // pred_check
    _
  $region27: #{resnet_block_forward.1} parent=0 // pred_check_branch
    %31 = sbr.rel (0) target = $region29
  $region28: #{resnet_block_forward.1} parent=0 // pred_region
    _
  $region29: #{resnet_block_forward.1} parent=0 // pred_fallthru
    _
  // Predicated region
  $region30: #{resnet_block_forward.1} parent=0 // pred_check
    _
  $region31: #{resnet_block_forward.1} parent=0 // pred_check_branch
    %33 = sbr.rel (0) target = $region33
  $region32: #{resnet_block_forward.1} parent=0 // pred_region
    _
  $region33: #{resnet_block_forward.1} parent=0 // pred_fallthru
    _
  // Predicated region
  $region34: #{resnet_block_forward.1} parent=0 // pred_check
    _
  $region35: #{resnet_block_forward.1} parent=0 // pred_check_branch
    %35 = sbr.rel (0) target = $region37
  $region36: #{resnet_block_forward.1} parent=0 // pred_region
    _
  $region37: #{resnet_block_forward.1} parent=0 // pred_fallthru
    _
  // Predicated region
  $region38: #{resnet_block_forward.1} parent=0 // pred_check
    _
  $region39: #{resnet_block_forward.1} parent=0 // pred_check_branch
    %37 = sbr.rel (0) target = $region41
  $region40: #{resnet_block_forward.1} parent=0 // pred_region
    _
  $region41: #{resnet_block_forward.1} parent=0 // pred_fallthru
    _
  // Predicated region
  $region42: #{resnet_block_forward.1} parent=0 // pred_check
    _
  $region43: #{resnet_block_forward.1} parent=0 // pred_check_branch
    %39 = sbr.rel (0) target = $region45
  $region44: #{resnet_block_forward.1} parent=0 // pred_region
    _
  $region45: #{resnet_block_forward.1} parent=0 // pred_fallthru
    _
  // Predicated region
  $region46: #{resnet_block_forward.1} parent=0 // pred_check
    _
  $region47: #{resnet_block_forward.1} parent=0 // pred_check_branch
    %41 = sbr.rel (0) target = $region49
  $region48: #{resnet_block_forward.1} parent=0 // pred_region
    _
  $region49: #{resnet_block_forward.1} parent=0 // pred_fallthru
    _
  // Predicated region
  $region50: #{resnet_block_forward.1} parent=0 // pred_check
    _
  $region51: #{resnet_block_forward.1} parent=0 // pred_check_branch
    %43 = sbr.rel (0) target = $region53
  $region52: #{resnet_block_forward.1} parent=0 // pred_region
    _
  $region53: #{resnet_block_forward.1} parent=0 // pred_fallthru
    _
  %v44 = vlaneseq
  %v45 = vshrl.u32 %v44, 7
  %v46 = vadd.s32 %v45, 8
  %v47 = vld [vmem:[%s0] sm:$0xf]
  %v48 = vld [vmem:[%s0 + $0x4] sm:$0xf]
  %v49 = vld [vmem:[%s0 + $0x8] sm:$0xf]
  %v50 = vld [vmem:[%s0 + $0xc] sm:$0xf]
  %v51 = vld [vmem:[%s1] sm:$0xf]
  %v52 = vld [vmem:[%s1 + $0x4] sm:$0xf]
  %v53 = vld [vmem:[%s1 + $0x8] sm:$0xf]
  %v54 = vld [vmem:[%s1 + $0xc] sm:$0xf]
  %v55 = vld [vmem:[%s1 + $0x10] sm:$0xf]
  %v56 = vld [vmem:[%s1 + $0x14] sm:$0xf]
  %v57 = vld [vmem:[%s1 + $0x18] sm:$0xf]
  %v58 = vld [vmem:[%s1 + $0x1c] sm:$0xf]
  %v59 = vld [vmem:[%s1 + $0x20] sm:$0xf]
  %v60 = vld [vmem:[%s1 + $0x24] sm:$0xf]
  %v61 = vld [vmem:[%s1 + $0x28] sm:$0xf]
  %v62 = vld [vmem:[%s1 + $0x2c] sm:$0xf]
  %v63 = vld [vmem:[%s1 + $0x30] sm:$0xf]
  %v64 = vld [vmem:[%s1 + $0x34] sm:$0xf]
  %v65 = vld [vmem:[%s1 + $0x38] sm:$0xf]
  %v66 = vld [vmem:[%s1 + $0x3c] sm:$0xf]
  %v71 = vunpack.c.l.b16 %v47
  %v72 = vunpack.c.l.b16 %v48
  %v73 = vunpack.c.l.b16 %v49
  %v74 = vunpack.c.l.b16 %v50
  %v75 = vpack.c.b16 %v72, %v71
  %v76 = vpack.c.b16 %v74, %v73
  %v95 = vunpack.c.l.b16 %v51
  %v96 = vunpack.c.l.b16 %v52
  %v97 = vunpack.c.l.b16 %v53
  %v98 = vunpack.c.l.b16 %v54
  %v99 = vunpack.c.l.b16 %v55
  %v100 = vunpack.c.l.b16 %v56
  %v101 = vunpack.c.l.b16 %v57
  %v102 = vunpack.c.l.b16 %v58
  %v103 = vunpack.c.l.b16 %v59
  %v104 = vunpack.c.l.b16 %v60
  %v105 = vunpack.c.l.b16 %v61
  %v106 = vunpack.c.l.b16 %v62
  %v107 = vunpack.c.l.b16 %v63
  %v108 = vunpack.c.l.b16 %v64
  %v109 = vunpack.c.l.b16 %v65
  %v110 = vunpack.c.l.b16 %v66
  %v111 = vpack.c.b16 %v96, %v95
  %v112 = vpack.c.b16 %v98, %v97
  %v113 = vpack.c.b16 %v100, %v99
  %v114 = vpack.c.b16 %v102, %v101
  %v115 = vpack.c.b16 %v104, %v103
  %v116 = vpack.c.b16 %v106, %v105
  %v117 = vpack.c.b16 %v108, %v107
  %v118 = vpack.c.b16 %v110, %v109
  %127 = vmatpush.bf16.msra.mxu0 %v118
  %128 = vmatpush.bf16.msra.mxu0 %v117
  %129 = vmatpush.bf16.msra.mxu0 %v116
  %130 = vmatpush.bf16.msra.mxu0 %v115
  %131 = vmatpush.bf16.msra.mxu0 %v114
  %132 = vmatpush.bf16.msra.mxu0 %v113
  %133 = vmatpush.bf16.msra.mxu0 %v112
  %134 = vmatpush.bf16.msra.mxu0 %v111
  %135 = vmatmul.bf16.gmra.mxu0 %v75
  %v136 = vpop.f32.mrf.mxu0
  %v137 = vadd.f32 0.0, %v136
  %v138 = vpop.f32.mrf.mxu0
  %v139 = vadd.f32 0.0, %v138
  %140 = vmatmul.bf16.gmra.mxu0 %v76
  %v141 = vpop.f32.mrf.mxu0
  %v142 = vadd.f32 0.0, %v141
  %v143 = vpop.f32.mrf.mxu0
  %v144 = vadd.f32 0.0, %v143
  %145 = vdwg.mxu0
  %vm146 = vcmask 261120
  %v148 = vsel %vm146, 1.0, 0
  %150 = vmatpush.msra.mxu0 0.0
  %151 = vmatpush.msra.mxu0 0.0
  %152 = vmatpush.msra.mxu0 0.0
  %153 = vmatpush.msra.mxu0 0.0
  %154 = vmatpush.msra.mxu0 0.0
  %155 = vmatpush.msra.mxu0 0.0
  %156 = vmatpush.msra.mxu0 0.0
  %157 = vmatpush.msra.mxu0 0.0
  %158 = vmatpush.msra.mxu0 0.0
  %159 = vmatpush.msra.mxu0 0.0
  %160 = vmatpush.msra.mxu0 0.0
  %161 = vmatpush.msra.mxu0 0.0
  %162 = vmatpush.msra.mxu0 %v144
  %163 = vmatpush.msra.mxu0 %v142
  %164 = vmatpush.msra.mxu0 %v139
  %165 = vmatpush.msra.mxu0 %v137
  %166 = vmatmul.f32.gmra.mxu0 %v148
  %v167 = vpop.f32.mrf.mxu0
  %v168 = vadd.f32 0.0, %v167
  %169 = vdwg.mxu0
  %v170 = vmul.f32 %v137, %v137
  %v171 = vmul.f32 %v139, %v139
  %v172 = vmul.f32 %v142, %v142
  %v173 = vmul.f32 %v144, %v144
  %174 = vmatpush.msra.mxu0 0.0
  %175 = vmatpush.msra.mxu0 0.0
  %176 = vmatpush.msra.mxu0 0.0
  %177 = vmatpush.msra.mxu0 0.0
  %178 = vmatpush.msra.mxu0 0.0
  %179 = vmatpush.msra.mxu0 0.0
  %180 = vmatpush.msra.mxu0 0.0
  %181 = vmatpush.msra.mxu0 0.0
  %182 = vmatpush.msra.mxu0 0.0
  %183 = vmatpush.msra.mxu0 0.0
  %184 = vmatpush.msra.mxu0 0.0
  %185 = vmatpush.msra.mxu0 0.0
  %186 = vmatpush.msra.mxu0 %v173
  %187 = vmatpush.msra.mxu0 %v172
  %188 = vmatpush.msra.mxu0 %v171
  %189 = vmatpush.msra.mxu0 %v170
  %190 = vmatmul.f32.gmra.mxu0 %v148
  %v191 = vpop.f32.mrf.mxu0
  %v192 = vadd.f32 0.0, %v191
  %193 = vdwg.mxu0
  %v194 = vmul.f32 %v168, 0.03125
  %v195 = vmul.f32 %v192, 0.03125
  %v196 = vmul.f32 %v194, %v194
  %v197 = vsub.f32 %v195, %v196
  %v198 = vmax.f32 %v197, 0.0
  %v199 = vld [vmem:[%s5] sm:$0x1]
  %v200 = vadd.f32 %v198, 1e-05
  %v201 = vrsqrt.pop %v200
  %v202 = vmul.f32 %v201, %v200
  %v203 = vmul.f32 %v202, %v201
  %v204 = vmul.f32 0.5, %v203
  %v205 = vsub.f32 1.5, %v204
  %v206 = vmul.f32 %v201, %v205
  %vm207 = vweird.f32 %v200
  %vm208 = vweird.f32 %v201
  %vm209 = vmor %vm207, %vm208
  %v210 = vsel %vm209, %v201, %v206
  %v211 = vmul.f32 %v199, %v210
  %v212 = vld [vmem:[%s6] sm:$0x1]
  %v213 = vmul.f32 %v194, %v211
  %v214 = vsub.f32 %v212, %v213
  %v216 = vperm.slane %v211, 0
  %v218 = vmul.f32 %v137, %v216
  %v219 = vmul.f32 %v139, %v216
  %v220 = vmul.f32 %v142, %v216
  %v221 = vmul.f32 %v144, %v216
  %v223 = vperm.slane %v214, 0
  %v225 = vadd.f32 %v218, %v223
  %v226 = vadd.f32 %v219, %v223
  %v227 = vadd.f32 %v220, %v223
  %v228 = vadd.f32 %v221, %v223
  %v229 = vmax.f32 %v225, 0.0
  %v230 = vmax.f32 %v226, 0.0
  %v231 = vmax.f32 %v227, 0.0
  %v232 = vmax.f32 %v228, 0.0
  %v233 = vld [vmem:[%s2] sm:$0xf]
  %v234 = vld [vmem:[%s2 + $0x4] sm:$0xf]
  %v235 = vld [vmem:[%s2 + $0x8] sm:$0xf]
  %v236 = vld [vmem:[%s2 + $0xc] sm:$0xf]
  %v237 = vld [vmem:[%s2 + $0x10] sm:$0xf]
  %v238 = vld [vmem:[%s2 + $0x14] sm:$0xf]
  %v239 = vld [vmem:[%s2 + $0x18] sm:$0xf]
  %v240 = vld [vmem:[%s2 + $0x1c] sm:$0xf]
  %v241 = vld [vmem:[%s2 + $0x20] sm:$0xf]
  %v242 = vld [vmem:[%s2 + $0x24] sm:$0xf]
  %v243 = vld [vmem:[%s2 + $0x28] sm:$0xf]
  %v244 = vld [vmem:[%s2 + $0x2c] sm:$0xf]
  %v245 = vld [vmem:[%s2 + $0x30] sm:$0xf]
  %v246 = vld [vmem:[%s2 + $0x34] sm:$0xf]
  %v247 = vld [vmem:[%s2 + $0x38] sm:$0xf]
  %v248 = vld [vmem:[%s2 + $0x3c] sm:$0xf]
  %v265 = vunpack.c.l.b16 %v233
  %v266 = vunpack.c.l.b16 %v234
  %v267 = vunpack.c.l.b16 %v235
  %v268 = vunpack.c.l.b16 %v236
  %v269 = vunpack.c.l.b16 %v237
  %v270 = vunpack.c.l.b16 %v238
  %v271 = vunpack.c.l.b16 %v239
  %v272 = vunpack.c.l.b16 %v240
  %v273 = vunpack.c.l.b16 %v241
  %v274 = vunpack.c.l.b16 %v242
  %v275 = vunpack.c.l.b16 %v243
  %v276 = vunpack.c.l.b16 %v244
  %v277 = vunpack.c.l.b16 %v245
  %v278 = vunpack.c.l.b16 %v246
  %v279 = vunpack.c.l.b16 %v247
  %v280 = vunpack.c.l.b16 %v248
  %v281 = vpack.c.b16 %v266, %v265
  %v282 = vpack.c.b16 %v268, %v267
  %v283 = vpack.c.b16 %v270, %v269
  %v284 = vpack.c.b16 %v272, %v271
  %v285 = vpack.c.b16 %v274, %v273
  %v286 = vpack.c.b16 %v276, %v275
  %v287 = vpack.c.b16 %v278, %v277
  %v288 = vpack.c.b16 %v280, %v279
  %297 = vmatpush.bf16.msra.mxu0 %v288
  %298 = vmatpush.bf16.msra.mxu0 %v287
  %299 = vmatpush.bf16.msra.mxu0 %v286
  %300 = vmatpush.bf16.msra.mxu0 %v285
  %301 = vmatpush.bf16.msra.mxu0 %v284
  %302 = vmatpush.bf16.msra.mxu0 %v283
  %303 = vmatpush.bf16.msra.mxu0 %v282
  %304 = vmatpush.bf16.msra.mxu0 %v281
  %305 = vmatmul.bf16.gmra.mxu0 %v75
  %v306 = vpop.f32.mrf.mxu0
  %v307 = vadd.f32 0.0, %v306
  %v308 = vpop.f32.mrf.mxu0
  %v309 = vadd.f32 0.0, %v308
  %310 = vmatmul.bf16.gmra.mxu0 %v76
  %v311 = vpop.f32.mrf.mxu0
  %v312 = vadd.f32 0.0, %v311
  %v313 = vpop.f32.mrf.mxu0
  %v314 = vadd.f32 0.0, %v313
  %315 = vdwg.mxu0
  %316 = vmatpush.msra.mxu0 0.0
  %317 = vmatpush.msra.mxu0 0.0
  %318 = vmatpush.msra.mxu0 0.0
  %319 = vmatpush.msra.mxu0 0.0
  %320 = vmatpush.msra.mxu0 0.0
  %321 = vmatpush.msra.mxu0 0.0
  %322 = vmatpush.msra.mxu0 0.0
  %323 = vmatpush.msra.mxu0 0.0
  %324 = vmatpush.msra.mxu0 0.0
  %325 = vmatpush.msra.mxu0 0.0
  %326 = vmatpush.msra.mxu0 0.0
  %327 = vmatpush.msra.mxu0 0.0
  %328 = vmatpush.msra.mxu0 %v314
  %329 = vmatpush.msra.mxu0 %v312
  %330 = vmatpush.msra.mxu0 %v309
  %331 = vmatpush.msra.mxu0 %v307
  %332 = vmatmul.f32.gmra.mxu0 %v148
  %v333 = vpop.f32.mrf.mxu0
  %v334 = vadd.f32 0.0, %v333
  %335 = vdwg.mxu0
  %v336 = vmul.f32 %v307, %v307
  %v337 = vmul.f32 %v309, %v309
  %v338 = vmul.f32 %v312, %v312
  %v339 = vmul.f32 %v314, %v314
  %340 = vmatpush.msra.mxu0 0.0
  %341 = vmatpush.msra.mxu0 0.0
  %342 = vmatpush.msra.mxu0 0.0
  %343 = vmatpush.msra.mxu0 0.0
  %344 = vmatpush.msra.mxu0 0.0
  %345 = vmatpush.msra.mxu0 0.0
  %346 = vmatpush.msra.mxu0 0.0
  %347 = vmatpush.msra.mxu0 0.0
  %348 = vmatpush.msra.mxu0 0.0
  %349 = vmatpush.msra.mxu0 0.0
  %350 = vmatpush.msra.mxu0 0.0
  %351 = vmatpush.msra.mxu0 0.0
  %352 = vmatpush.msra.mxu0 %v339
  %353 = vmatpush.msra.mxu0 %v338
  %354 = vmatpush.msra.mxu0 %v337
  %355 = vmatpush.msra.mxu0 %v336
  %356 = vmatmul.f32.gmra.mxu0 %v148
  %v357 = vpop.f32.mrf.mxu0
  %v358 = vadd.f32 0.0, %v357
  %359 = vdwg.mxu0
  %v360 = vmul.f32 %v334, 0.03125
  %v361 = vmul.f32 %v358, 0.03125
  %v362 = vmul.f32 %v360, %v360
  %v363 = vsub.f32 %v361, %v362
  %v364 = vmax.f32 %v363, 0.0
  %v365 = vld [vmem:[%s7] sm:$0x1]
  %v366 = vadd.f32 %v364, 1e-05
  %v367 = vrsqrt.pop %v366
  %v368 = vmul.f32 %v367, %v366
  %v369 = vmul.f32 %v368, %v367
  %v370 = vmul.f32 0.5, %v369
  %v371 = vsub.f32 1.5, %v370
  %v372 = vmul.f32 %v367, %v371
  %vm373 = vweird.f32 %v366
  %vm374 = vweird.f32 %v367
  %vm375 = vmor %vm373, %vm374
  %v376 = vsel %vm375, %v367, %v372
  %v377 = vmul.f32 %v365, %v376
  %v378 = vld [vmem:[%s8] sm:$0x1]
  %v379 = vmul.f32 %v360, %v377
  %v380 = vsub.f32 %v378, %v379
  %v382 = vperm.slane %v377, 0
  %v384 = vmul.f32 %v307, %v382
  %v385 = vmul.f32 %v309, %v382
  %v386 = vmul.f32 %v312, %v382
  %v387 = vmul.f32 %v314, %v382
  %v389 = vperm.slane %v380, 0
  %v391 = vadd.f32 %v384, %v389
  %v392 = vadd.f32 %v385, %v389
  %v393 = vadd.f32 %v386, %v389
  %v394 = vadd.f32 %v387, %v389
  %v395 = vrot.slane %v229, 6
  %v396 = vrot.slane %v230, 6
  %v397 = vrot.slane %v231, 6
  %v398 = vrot.slane %v232, 6
  %vm399 = vcmp.lt.s32.totalorder %v45, 2
  %v400 = vsel %vm399, %v397, %v398
  %v401 = vsel %vm399, %v396, %v397
  %v402 = vsel %vm399, %v395, %v396
  %v403 = vsel %vm399, %v398, %v395
  %vm404 = vcmp.ge.s32.totalorder %v45, 2
  %vm405 = vcmp.ge.s32.totalorder %v46, 2
  %v406 = vsel %vm404, 1, 0
  %v407 = vsel %vm405, 1, 0
  %v408 = vcvt.s32.f32 %v406
  %v409 = vcvt.s32.f32 %v407
  %v410 = vmul.f32 %v403, %v408
  %v411 = vmul.f32 %v402, %v409
  %v412 = vmul.f32 %v401, %v408
  %v413 = vmul.f32 %v400, %v409
  %v414 = vpack.c.bf16 %v411, %v410
  %v415 = vpack.c.bf16 %v413, %v412
  %v416 = vld [vmem:[%s3] sm:$0xf]
  %v417 = vld [vmem:[%s3 + $0x4] sm:$0xf]
  %v418 = vld [vmem:[%s3 + $0x8] sm:$0xf]
  %v419 = vld [vmem:[%s3 + $0xc] sm:$0xf]
  %v420 = vld [vmem:[%s3 + $0x10] sm:$0xf]
  %v421 = vld [vmem:[%s3 + $0x14] sm:$0xf]
  %v422 = vld [vmem:[%s3 + $0x18] sm:$0xf]
  %v423 = vld [vmem:[%s3 + $0x1c] sm:$0xf]
  %v424 = vld [vmem:[%s3 + $0x20] sm:$0xf]
  %v425 = vld [vmem:[%s3 + $0x24] sm:$0xf]
  %v426 = vld [vmem:[%s3 + $0x28] sm:$0xf]
  %v427 = vld [vmem:[%s3 + $0x2c] sm:$0xf]
  %v428 = vld [vmem:[%s3 + $0x30] sm:$0xf]
  %v429 = vld [vmem:[%s3 + $0x34] sm:$0xf]
  %v430 = vld [vmem:[%s3 + $0x38] sm:$0xf]
  %v431 = vld [vmem:[%s3 + $0x3c] sm:$0xf]
  %v432 = vrot.slane %v229, 7
  %v433 = vrot.slane %v230, 7
  %v434 = vrot.slane %v231, 7
  %v435 = vrot.slane %v232, 7
  %vm436 = vcmp.lt.s32.totalorder %v45, 1
  %v437 = vsel %vm436, %v434, %v435
  %v438 = vsel %vm436, %v433, %v434
  %v439 = vsel %vm436, %v432, %v433
  %v440 = vsel %vm436, %v435, %v432
  %vm441 = vcmp.ge.s32.totalorder %v45, 1
  %vm442 = vcmp.ge.s32.totalorder %v46, 1
  %v443 = vsel %vm441, 1, 0
  %v444 = vsel %vm442, 1, 0
  %v445 = vcvt.s32.f32 %v443
  %v446 = vcvt.s32.f32 %v444
  %v447 = vmul.f32 %v440, %v445
  %v448 = vmul.f32 %v439, %v446
  %v449 = vmul.f32 %v438, %v445
  %v450 = vmul.f32 %v437, %v446
  %v451 = vpack.c.bf16 %v448, %v447
  %v452 = vpack.c.bf16 %v450, %v449
  %s453 = scalar_lea.vmem %s3, 64
  %v454 = vld [vmem:[%s453] sm:$0xf]
  %v455 = vld [vmem:[%s453 + $0x4] sm:$0xf]
  %v456 = vld [vmem:[%s453 + $0x8] sm:$0xf]
  %v457 = vld [vmem:[%s453 + $0xc] sm:$0xf]
  %v458 = vld [vmem:[%s453 + $0x10] sm:$0xf]
  %v459 = vld [vmem:[%s453 + $0x14] sm:$0xf]
  %v460 = vld [vmem:[%s453 + $0x18] sm:$0xf]
  %v461 = vld [vmem:[%s453 + $0x1c] sm:$0xf]
  %v462 = vld [vmem:[%s453 + $0x20] sm:$0xf]
  %v463 = vld [vmem:[%s453 + $0x24] sm:$0xf]
  %v464 = vld [vmem:[%s453 + $0x28] sm:$0xf]
  %v465 = vld [vmem:[%s453 + $0x2c] sm:$0xf]
  %v466 = vld [vmem:[%s453 + $0x30] sm:$0xf]
  %v467 = vld [vmem:[%s453 + $0x34] sm:$0xf]
  %v468 = vld [vmem:[%s453 + $0x38] sm:$0xf]
  %v469 = vld [vmem:[%s453 + $0x3c] sm:$0xf]
  %v486 = vunpack.c.l.b16 %v454
  %v487 = vunpack.c.l.b16 %v455
  %v488 = vunpack.c.l.b16 %v456
  %v489 = vunpack.c.l.b16 %v457
  %v490 = vunpack.c.l.b16 %v458
  %v491 = vunpack.c.l.b16 %v459
  %v492 = vunpack.c.l.b16 %v460
  %v493 = vunpack.c.l.b16 %v461
  %v494 = vunpack.c.l.b16 %v462
  %v495 = vunpack.c.l.b16 %v463
  %v496 = vunpack.c.l.b16 %v464
  %v497 = vunpack.c.l.b16 %v465
  %v498 = vunpack.c.l.b16 %v466
  %v499 = vunpack.c.l.b16 %v467
  %v500 = vunpack.c.l.b16 %v468
  %v501 = vunpack.c.l.b16 %v469
  %v502 = vpack.c.b16 %v487, %v486
  %v503 = vpack.c.b16 %v489, %v488
  %v504 = vpack.c.b16 %v491, %v490
  %v505 = vpack.c.b16 %v493, %v492
  %v506 = vpack.c.b16 %v495, %v494
  %v507 = vpack.c.b16 %v497, %v496
  %v508 = vpack.c.b16 %v499, %v498
  %v509 = vpack.c.b16 %v501, %v500
  %518 = vmatpush.bf16.msra.mxu0 %v509
  %519 = vmatpush.bf16.msra.mxu0 %v508
  %520 = vmatpush.bf16.msra.mxu0 %v507
  %521 = vmatpush.bf16.msra.mxu0 %v506
  %522 = vmatpush.bf16.msra.mxu0 %v505
  %523 = vmatpush.bf16.msra.mxu0 %v504
  %524 = vmatpush.bf16.msra.mxu0 %v503
  %525 = vmatpush.bf16.msra.mxu0 %v502
  %526 = vmatmul.bf16.gmra.mxu0 %v451
  %v527 = vpop.f32.mrf.mxu0
  %v528 = vadd.f32 0.0, %v527
  %v529 = vpop.f32.mrf.mxu0
  %v530 = vadd.f32 0.0, %v529
  %531 = vmatmul.bf16.gmra.mxu0 %v452
  %v532 = vpop.f32.mrf.mxu0
  %v533 = vadd.f32 0.0, %v532
  %v534 = vpop.f32.mrf.mxu0
  %v535 = vadd.f32 0.0, %v534
  %536 = vdwg.mxu0
  %v553 = vunpack.c.l.b16 %v416
  %v554 = vunpack.c.l.b16 %v417
  %v555 = vunpack.c.l.b16 %v418
  %v556 = vunpack.c.l.b16 %v419
  %v557 = vunpack.c.l.b16 %v420
  %v558 = vunpack.c.l.b16 %v421
  %v559 = vunpack.c.l.b16 %v422
  %v560 = vunpack.c.l.b16 %v423
  %v561 = vunpack.c.l.b16 %v424
  %v562 = vunpack.c.l.b16 %v425
  %v563 = vunpack.c.l.b16 %v426
  %v564 = vunpack.c.l.b16 %v427
  %v565 = vunpack.c.l.b16 %v428
  %v566 = vunpack.c.l.b16 %v429
  %v567 = vunpack.c.l.b16 %v430
  %v568 = vunpack.c.l.b16 %v431
  %v569 = vpack.c.b16 %v554, %v553
  %v570 = vpack.c.b16 %v556, %v555
  %v571 = vpack.c.b16 %v558, %v557
  %v572 = vpack.c.b16 %v560, %v559
  %v573 = vpack.c.b16 %v562, %v561
  %v574 = vpack.c.b16 %v564, %v563
  %v575 = vpack.c.b16 %v566, %v565
  %v576 = vpack.c.b16 %v568, %v567
  %585 = vmatpush.bf16.msra.mxu0 %v576
  %586 = vmatpush.bf16.msra.mxu0 %v575
  %587 = vmatpush.bf16.msra.mxu0 %v574
  %588 = vmatpush.bf16.msra.mxu0 %v573
  %589 = vmatpush.bf16.msra.mxu0 %v572
  %590 = vmatpush.bf16.msra.mxu0 %v571
  %591 = vmatpush.bf16.msra.mxu0 %v570
  %592 = vmatpush.bf16.msra.mxu0 %v569
  %593 = vmatmul.bf16.gmra.mxu0 %v414
  %v594 = vpop.f32.mrf.mxu0
  %v595 = vadd.f32 %v528, %v594
  %v596 = vpop.f32.mrf.mxu0
  %v597 = vadd.f32 %v530, %v596
  %598 = vmatmul.bf16.gmra.mxu0 %v415
  %v599 = vpop.f32.mrf.mxu0
  %v600 = vadd.f32 %v533, %v599
  %v601 = vpop.f32.mrf.mxu0
  %v602 = vadd.f32 %v535, %v601
  %603 = vdwg.mxu0
  %v604 = vpack.c.bf16 %v230, %v229
  %v605 = vpack.c.bf16 %v232, %v231
  %s606 = scalar_lea.vmem %s3, 128
  %v607 = vld [vmem:[%s606] sm:$0xf]
  %v608 = vld [vmem:[%s606 + $0x4] sm:$0xf]
  %v609 = vld [vmem:[%s606 + $0x8] sm:$0xf]
  %v610 = vld [vmem:[%s606 + $0xc] sm:$0xf]
  %v611 = vld [vmem:[%s606 + $0x10] sm:$0xf]
  %v612 = vld [vmem:[%s606 + $0x14] sm:$0xf]
  %v613 = vld [vmem:[%s606 + $0x18] sm:$0xf]
  %v614 = vld [vmem:[%s606 + $0x1c] sm:$0xf]
  %v615 = vld [vmem:[%s606 + $0x20] sm:$0xf]
  %v616 = vld [vmem:[%s606 + $0x24] sm:$0xf]
  %v617 = vld [vmem:[%s606 + $0x28] sm:$0xf]
  %v618 = vld [vmem:[%s606 + $0x2c] sm:$0xf]
  %v619 = vld [vmem:[%s606 + $0x30] sm:$0xf]
  %v620 = vld [vmem:[%s606 + $0x34] sm:$0xf]
  %v621 = vld [vmem:[%s606 + $0x38] sm:$0xf]
  %v622 = vld [vmem:[%s606 + $0x3c] sm:$0xf]
  %v639 = vunpack.c.l.b16 %v607
  %v640 = vunpack.c.l.b16 %v608
  %v641 = vunpack.c.l.b16 %v609
  %v642 = vunpack.c.l.b16 %v610
  %v643 = vunpack.c.l.b16 %v611
  %v644 = vunpack.c.l.b16 %v612
  %v645 = vunpack.c.l.b16 %v613
  %v646 = vunpack.c.l.b16 %v614
  %v647 = vunpack.c.l.b16 %v615
  %v648 = vunpack.c.l.b16 %v616
  %v649 = vunpack.c.l.b16 %v617
  %v650 = vunpack.c.l.b16 %v618
  %v651 = vunpack.c.l.b16 %v619
  %v652 = vunpack.c.l.b16 %v620
  %v653 = vunpack.c.l.b16 %v621
  %v654 = vunpack.c.l.b16 %v622
  %v655 = vpack.c.b16 %v640, %v639
  %v656 = vpack.c.b16 %v642, %v641
  %v657 = vpack.c.b16 %v644, %v643
  %v658 = vpack.c.b16 %v646, %v645
  %v659 = vpack.c.b16 %v648, %v647
  %v660 = vpack.c.b16 %v650, %v649
  %v661 = vpack.c.b16 %v652, %v651
  %v662 = vpack.c.b16 %v654, %v653
  %671 = vmatpush.bf16.msra.mxu0 %v662
  %672 = vmatpush.bf16.msra.mxu0 %v661
  %673 = vmatpush.bf16.msra.mxu0 %v660
  %674 = vmatpush.bf16.msra.mxu0 %v659
  %675 = vmatpush.bf16.msra.mxu0 %v658
  %676 = vmatpush.bf16.msra.mxu0 %v657
  %677 = vmatpush.bf16.msra.mxu0 %v656
  %678 = vmatpush.bf16.msra.mxu0 %v655
  %679 = vmatmul.bf16.gmra.mxu0 %v604
  %v680 = vpop.f32.mrf.mxu0
  %v681 = vadd.f32 0.0, %v680
  %v682 = vpop.f32.mrf.mxu0
  %v683 = vadd.f32 0.0, %v682
  %684 = vmatmul.bf16.gmra.mxu0 %v605
  %v685 = vpop.f32.mrf.mxu0
  %v686 = vadd.f32 0.0, %v685
  %v687 = vpop.f32.mrf.mxu0
  %v688 = vadd.f32 0.0, %v687
  %689 = vdwg.mxu0
  %v690 = vadd.f32 %v595, %v681
  %v691 = vadd.f32 %v597, %v683
  %v692 = vadd.f32 %v600, %v686
  %v693 = vadd.f32 %v602, %v688
  %v694 = vrot.slane %v229, 1
  %v695 = vrot.slane %v230, 1
  %v696 = vrot.slane %v231, 1
  %v697 = vrot.slane %v232, 1
  %vm698 = vcmp.lt.s32.totalorder %v45, 7
  %v699 = vsel %vm698, %v696, %v697
  %v700 = vsel %vm698, %v695, %v696
  %v701 = vsel %vm698, %v694, %v695
  %v702 = vsel %vm698, %v697, %v694
  %vm703 = vcmp.lt.s32.totalorder %v45, 15
  %vm704 = vcmp.lt.s32.totalorder %v46, 15
  %v705 = vsel %vm703, 1, 0
  %v706 = vsel %vm704, 1, 0
  %v707 = vcvt.s32.f32 %v705
  %v708 = vcvt.s32.f32 %v706
  %v709 = vmul.f32 %v701, %v707
  %v710 = vmul.f32 %v700, %v708
  %v711 = vmul.f32 %v699, %v707
  %v712 = vmul.f32 %v702, %v708
  %v713 = vpack.c.bf16 %v710, %v709
  %v714 = vpack.c.bf16 %v712, %v711
  %s715 = scalar_lea.vmem %s3, 192
  %v716 = vld [vmem:[%s715] sm:$0xf]
  %v717 = vld [vmem:[%s715 + $0x4] sm:$0xf]
  %v718 = vld [vmem:[%s715 + $0x8] sm:$0xf]
  %v719 = vld [vmem:[%s715 + $0xc] sm:$0xf]
  %v720 = vld [vmem:[%s715 + $0x10] sm:$0xf]
  %v721 = vld [vmem:[%s715 + $0x14] sm:$0xf]
  %v722 = vld [vmem:[%s715 + $0x18] sm:$0xf]
  %v723 = vld [vmem:[%s715 + $0x1c] sm:$0xf]
  %v724 = vld [vmem:[%s715 + $0x20] sm:$0xf]
  %v725 = vld [vmem:[%s715 + $0x24] sm:$0xf]
  %v726 = vld [vmem:[%s715 + $0x28] sm:$0xf]
  %v727 = vld [vmem:[%s715 + $0x2c] sm:$0xf]
  %v728 = vld [vmem:[%s715 + $0x30] sm:$0xf]
  %v729 = vld [vmem:[%s715 + $0x34] sm:$0xf]
  %v730 = vld [vmem:[%s715 + $0x38] sm:$0xf]
  %v731 = vld [vmem:[%s715 + $0x3c] sm:$0xf]
  %v748 = vunpack.c.l.b16 %v716
  %v749 = vunpack.c.l.b16 %v717
  %v750 = vunpack.c.l.b16 %v718
  %v751 = vunpack.c.l.b16 %v719
  %v752 = vunpack.c.l.b16 %v720
  %v753 = vunpack.c.l.b16 %v721
  %v754 = vunpack.c.l.b16 %v722
  %v755 = vunpack.c.l.b16 %v723
  %v756 = vunpack.c.l.b16 %v724
  %v757 = vunpack.c.l.b16 %v725
  %v758 = vunpack.c.l.b16 %v726
  %v759 = vunpack.c.l.b16 %v727
  %v760 = vunpack.c.l.b16 %v728
  %v761 = vunpack.c.l.b16 %v729
  %v762 = vunpack.c.l.b16 %v730
  %v763 = vunpack.c.l.b16 %v731
  %v764 = vpack.c.b16 %v749, %v748
  %v765 = vpack.c.b16 %v751, %v750
  %v766 = vpack.c.b16 %v753, %v752
  %v767 = vpack.c.b16 %v755, %v754
  %v768 = vpack.c.b16 %v757, %v756
  %v769 = vpack.c.b16 %v759, %v758
  %v770 = vpack.c.b16 %v761, %v760
  %v771 = vpack.c.b16 %v763, %v762
  %780 = vmatpush.bf16.msra.mxu0 %v771
  %781 = vmatpush.bf16.msra.mxu0 %v770
  %782 = vmatpush.bf16.msra.mxu0 %v769
  %783 = vmatpush.bf16.msra.mxu0 %v768
  %784 = vmatpush.bf16.msra.mxu0 %v767
  %785 = vmatpush.bf16.msra.mxu0 %v766
  %786 = vmatpush.bf16.msra.mxu0 %v765
  %787 = vmatpush.bf16.msra.mxu0 %v764
  %788 = vmatmul.bf16.gmra.mxu0 %v713
  %v789 = vpop.f32.mrf.mxu0
  %v790 = vadd.f32 0.0, %v789
  %v791 = vpop.f32.mrf.mxu0
  %v792 = vadd.f32 0.0, %v791
  %793 = vmatmul.bf16.gmra.mxu0 %v714
  %v794 = vpop.f32.mrf.mxu0
  %v795 = vadd.f32 0.0, %v794
  %v796 = vpop.f32.mrf.mxu0
  %v797 = vadd.f32 0.0, %v796
  %798 = vdwg.mxu0
  %v799 = vadd.f32 %v690, %v790
  %v800 = vadd.f32 %v691, %v792
  %v801 = vadd.f32 %v692, %v795
  %v802 = vadd.f32 %v693, %v797
  %v803 = vrot.slane %v229, 2
  %v804 = vrot.slane %v230, 2
  %v805 = vrot.slane %v231, 2
  %v806 = vrot.slane %v232, 2
  %vm807 = vcmp.lt.s32.totalorder %v45, 6
  %v808 = vsel %vm807, %v805, %v806
  %v809 = vsel %vm807, %v804, %v805
  %v810 = vsel %vm807, %v803, %v804
  %v811 = vsel %vm807, %v806, %v803
  %vm812 = vcmp.lt.s32.totalorder %v45, 14
  %vm813 = vcmp.lt.s32.totalorder %v46, 14
  %v814 = vsel %vm812, 1, 0
  %v815 = vsel %vm813, 1, 0
  %v816 = vcvt.s32.f32 %v814
  %v817 = vcvt.s32.f32 %v815
  %v818 = vmul.f32 %v810, %v816
  %v819 = vmul.f32 %v809, %v817
  %v820 = vmul.f32 %v808, %v816
  %v821 = vmul.f32 %v811, %v817
  %v822 = vpack.c.bf16 %v819, %v818
  %v823 = vpack.c.bf16 %v821, %v820
  %s824 = scalar_lea.vmem %s3, 256
  %v825 = vld [vmem:[%s824] sm:$0xf]
  %v826 = vld [vmem:[%s824 + $0x4] sm:$0xf]
  %v827 = vld [vmem:[%s824 + $0x8] sm:$0xf]
  %v828 = vld [vmem:[%s824 + $0xc] sm:$0xf]
  %v829 = vld [vmem:[%s824 + $0x10] sm:$0xf]
  %v830 = vld [vmem:[%s824 + $0x14] sm:$0xf]
  %v831 = vld [vmem:[%s824 + $0x18] sm:$0xf]
  %v832 = vld [vmem:[%s824 + $0x1c] sm:$0xf]
  %v833 = vld [vmem:[%s824 + $0x20] sm:$0xf]
  %v834 = vld [vmem:[%s824 + $0x24] sm:$0xf]
  %v835 = vld [vmem:[%s824 + $0x28] sm:$0xf]
  %v836 = vld [vmem:[%s824 + $0x2c] sm:$0xf]
  %v837 = vld [vmem:[%s824 + $0x30] sm:$0xf]
  %v838 = vld [vmem:[%s824 + $0x34] sm:$0xf]
  %v839 = vld [vmem:[%s824 + $0x38] sm:$0xf]
  %v840 = vld [vmem:[%s824 + $0x3c] sm:$0xf]
  %v857 = vunpack.c.l.b16 %v825
  %v858 = vunpack.c.l.b16 %v826
  %v859 = vunpack.c.l.b16 %v827
  %v860 = vunpack.c.l.b16 %v828
  %v861 = vunpack.c.l.b16 %v829
  %v862 = vunpack.c.l.b16 %v830
  %v863 = vunpack.c.l.b16 %v831
  %v864 = vunpack.c.l.b16 %v832
  %v865 = vunpack.c.l.b16 %v833
  %v866 = vunpack.c.l.b16 %v834
  %v867 = vunpack.c.l.b16 %v835
  %v868 = vunpack.c.l.b16 %v836
  %v869 = vunpack.c.l.b16 %v837
  %v870 = vunpack.c.l.b16 %v838
  %v871 = vunpack.c.l.b16 %v839
  %v872 = vunpack.c.l.b16 %v840
  %v873 = vpack.c.b16 %v858, %v857
  %v874 = vpack.c.b16 %v860, %v859
  %v875 = vpack.c.b16 %v862, %v861
  %v876 = vpack.c.b16 %v864, %v863
  %v877 = vpack.c.b16 %v866, %v865
  %v878 = vpack.c.b16 %v868, %v867
  %v879 = vpack.c.b16 %v870, %v869
  %v880 = vpack.c.b16 %v872, %v871
  %889 = vmatpush.bf16.msra.mxu0 %v880
  %890 = vmatpush.bf16.msra.mxu0 %v879
  %891 = vmatpush.bf16.msra.mxu0 %v878
  %892 = vmatpush.bf16.msra.mxu0 %v877
  %893 = vmatpush.bf16.msra.mxu0 %v876
  %894 = vmatpush.bf16.msra.mxu0 %v875
  %895 = vmatpush.bf16.msra.mxu0 %v874
  %896 = vmatpush.bf16.msra.mxu0 %v873
  %897 = vmatmul.bf16.gmra.mxu0 %v822
  %v898 = vpop.f32.mrf.mxu0
  %v899 = vadd.f32 0.0, %v898
  %v900 = vpop.f32.mrf.mxu0
  %v901 = vadd.f32 0.0, %v900
  %902 = vmatmul.bf16.gmra.mxu0 %v823
  %v903 = vpop.f32.mrf.mxu0
  %v904 = vadd.f32 0.0, %v903
  %v905 = vpop.f32.mrf.mxu0
  %v906 = vadd.f32 0.0, %v905
  %907 = vdwg.mxu0
  %v908 = vadd.f32 %v799, %v899
  %v909 = vadd.f32 %v800, %v901
  %v910 = vadd.f32 %v801, %v904
  %v911 = vadd.f32 %v802, %v906
  %912 = vmatpush.msra.mxu0 0.0
  %913 = vmatpush.msra.mxu0 0.0
  %914 = vmatpush.msra.mxu0 0.0
  %915 = vmatpush.msra.mxu0 0.0
  %916 = vmatpush.msra.mxu0 0.0
  %917 = vmatpush.msra.mxu0 0.0
  %918 = vmatpush.msra.mxu0 0.0
  %919 = vmatpush.msra.mxu0 0.0
  %920 = vmatpush.msra.mxu0 0.0
  %921 = vmatpush.msra.mxu0 0.0
  %922 = vmatpush.msra.mxu0 0.0
  %923 = vmatpush.msra.mxu0 0.0
  %924 = vmatpush.msra.mxu0 %v911
  %925 = vmatpush.msra.mxu0 %v910
  %926 = vmatpush.msra.mxu0 %v909
  %927 = vmatpush.msra.mxu0 %v908
  %928 = vmatmul.f32.gmra.mxu0 %v148
  %v929 = vpop.f32.mrf.mxu0
  %v930 = vadd.f32 0.0, %v929
  %931 = vdwg.mxu0
  %v932 = vmul.f32 %v908, %v908
  %v933 = vmul.f32 %v909, %v909
  %v934 = vmul.f32 %v910, %v910
  %v935 = vmul.f32 %v911, %v911
  %936 = vmatpush.msra.mxu0 0.0
  %937 = vmatpush.msra.mxu0 0.0
  %938 = vmatpush.msra.mxu0 0.0
  %939 = vmatpush.msra.mxu0 0.0
  %940 = vmatpush.msra.mxu0 0.0
  %941 = vmatpush.msra.mxu0 0.0
  %942 = vmatpush.msra.mxu0 0.0
  %943 = vmatpush.msra.mxu0 0.0
  %944 = vmatpush.msra.mxu0 0.0
  %945 = vmatpush.msra.mxu0 0.0
  %946 = vmatpush.msra.mxu0 0.0
  %947 = vmatpush.msra.mxu0 0.0
  %948 = vmatpush.msra.mxu0 %v935
  %949 = vmatpush.msra.mxu0 %v934
  %950 = vmatpush.msra.mxu0 %v933
  %951 = vmatpush.msra.mxu0 %v932
  %952 = vmatmul.f32.gmra.mxu0 %v148
  %v953 = vpop.f32.mrf.mxu0
  %v954 = vadd.f32 0.0, %v953
  %955 = vdwg.mxu0
  %v956 = vmul.f32 %v930, 0.03125
  %v957 = vmul.f32 %v954, 0.03125
  %v958 = vmul.f32 %v956, %v956
  %v959 = vsub.f32 %v957, %v958
  %v960 = vmax.f32 %v959, 0.0
  %v961 = vld [vmem:[%s9] sm:$0x1]
  %v962 = vadd.f32 %v960, 1e-05
  %v963 = vrsqrt.pop %v962
  %v964 = vmul.f32 %v963, %v962
  %v965 = vmul.f32 %v964, %v963
  %v966 = vmul.f32 0.5, %v965
  %v967 = vsub.f32 1.5, %v966
  %v968 = vmul.f32 %v963, %v967
  %vm969 = vweird.f32 %v962
  %vm970 = vweird.f32 %v963
  %vm971 = vmor %vm969, %vm970
  %v972 = vsel %vm971, %v963, %v968
  %v973 = vmul.f32 %v961, %v972
  %v974 = vld [vmem:[%s10] sm:$0x1]
  %v975 = vmul.f32 %v956, %v973
  %v976 = vsub.f32 %v974, %v975
  %v978 = vperm.slane %v973, 0
  %v980 = vmul.f32 %v908, %v978
  %v981 = vmul.f32 %v909, %v978
  %v982 = vmul.f32 %v910, %v978
  %v983 = vmul.f32 %v911, %v978
  %v985 = vperm.slane %v976, 0
  %v987 = vadd.f32 %v980, %v985
  %v988 = vadd.f32 %v981, %v985
  %v989 = vadd.f32 %v982, %v985
  %v990 = vadd.f32 %v983, %v985
  %v991 = vmax.f32 %v987, 0.0
  %v992 = vmax.f32 %v988, 0.0
  %v993 = vmax.f32 %v989, 0.0
  %v994 = vmax.f32 %v990, 0.0
  %v995 = vrot.slane %v991, 7
  %v996 = vrot.slane %v992, 7
  %v997 = vrot.slane %v993, 7
  %v998 = vrot.slane %v994, 7
  %v999 = vsel %vm436, %v997, %v998
  %v1000 = vsel %vm436, %v996, %v997
  %v1001 = vsel %vm436, %v995, %v996
  %v1002 = vsel %vm436, %v998, %v995
  %v1003 = vmul.f32 %v1002, %v445
  %v1004 = vmul.f32 %v1001, %v446
  %v1005 = vmul.f32 %v1000, %v445
  %v1006 = vmul.f32 %v999, %v446
  %v1007 = vpack.c.bf16 %v1004, %v1003
  %v1008 = vpack.c.bf16 %v1006, %v1005
  %v1009 = vld [vmem:[%s4] sm:$0xf]
  %v1010 = vld [vmem:[%s4 + $0x4] sm:$0xf]
  %v1011 = vld [vmem:[%s4 + $0x8] sm:$0xf]
  %v1012 = vld [vmem:[%s4 + $0xc] sm:$0xf]
  %v1013 = vld [vmem:[%s4 + $0x10] sm:$0xf]
  %v1014 = vld [vmem:[%s4 + $0x14] sm:$0xf]
  %v1015 = vld [vmem:[%s4 + $0x18] sm:$0xf]
  %v1016 = vld [vmem:[%s4 + $0x1c] sm:$0xf]
  %v1017 = vld [vmem:[%s4 + $0x20] sm:$0xf]
  %v1018 = vld [vmem:[%s4 + $0x24] sm:$0xf]
  %v1019 = vld [vmem:[%s4 + $0x28] sm:$0xf]
  %v1020 = vld [vmem:[%s4 + $0x2c] sm:$0xf]
  %v1021 = vld [vmem:[%s4 + $0x30] sm:$0xf]
  %v1022 = vld [vmem:[%s4 + $0x34] sm:$0xf]
  %v1023 = vld [vmem:[%s4 + $0x38] sm:$0xf]
  %v1024 = vld [vmem:[%s4 + $0x3c] sm:$0xf]
  %v1025 = vpack.c.bf16 %v992, %v991
  %v1026 = vpack.c.bf16 %v994, %v993
  %s1027 = scalar_lea.vmem %s4, 64
  %v1028 = vld [vmem:[%s1027] sm:$0xf]
  %v1029 = vld [vmem:[%s1027 + $0x4] sm:$0xf]
  %v1030 = vld [vmem:[%s1027 + $0x8] sm:$0xf]
  %v1031 = vld [vmem:[%s1027 + $0xc] sm:$0xf]
  %v1032 = vld [vmem:[%s1027 + $0x10] sm:$0xf]
  %v1033 = vld [vmem:[%s1027 + $0x14] sm:$0xf]
  %v1034 = vld [vmem:[%s1027 + $0x18] sm:$0xf]
  %v1035 = vld [vmem:[%s1027 + $0x1c] sm:$0xf]
  %v1036 = vld [vmem:[%s1027 + $0x20] sm:$0xf]
  %v1037 = vld [vmem:[%s1027 + $0x24] sm:$0xf]
  %v1038 = vld [vmem:[%s1027 + $0x28] sm:$0xf]
  %v1039 = vld [vmem:[%s1027 + $0x2c] sm:$0xf]
  %v1040 = vld [vmem:[%s1027 + $0x30] sm:$0xf]
  %v1041 = vld [vmem:[%s1027 + $0x34] sm:$0xf]
  %v1042 = vld [vmem:[%s1027 + $0x38] sm:$0xf]
  %v1043 = vld [vmem:[%s1027 + $0x3c] sm:$0xf]
  %v1060 = vunpack.c.l.b16 %v1028
  %v1061 = vunpack.c.l.b16 %v1029
  %v1062 = vunpack.c.l.b16 %v1030
  %v1063 = vunpack.c.l.b16 %v1031
  %v1064 = vunpack.c.l.b16 %v1032
  %v1065 = vunpack.c.l.b16 %v1033
  %v1066 = vunpack.c.l.b16 %v1034
  %v1067 = vunpack.c.l.b16 %v1035
  %v1068 = vunpack.c.l.b16 %v1036
  %v1069 = vunpack.c.l.b16 %v1037
  %v1070 = vunpack.c.l.b16 %v1038
  %v1071 = vunpack.c.l.b16 %v1039
  %v1072 = vunpack.c.l.b16 %v1040
  %v1073 = vunpack.c.l.b16 %v1041
  %v1074 = vunpack.c.l.b16 %v1042
  %v1075 = vunpack.c.l.b16 %v1043
  %v1076 = vpack.c.b16 %v1061, %v1060
  %v1077 = vpack.c.b16 %v1063, %v1062
  %v1078 = vpack.c.b16 %v1065, %v1064
  %v1079 = vpack.c.b16 %v1067, %v1066
  %v1080 = vpack.c.b16 %v1069, %v1068
  %v1081 = vpack.c.b16 %v1071, %v1070
  %v1082 = vpack.c.b16 %v1073, %v1072
  %v1083 = vpack.c.b16 %v1075, %v1074
  %1092 = vmatpush.bf16.msra.mxu0 %v1083
  %1093 = vmatpush.bf16.msra.mxu0 %v1082
  %1094 = vmatpush.bf16.msra.mxu0 %v1081
  %1095 = vmatpush.bf16.msra.mxu0 %v1080
  %1096 = vmatpush.bf16.msra.mxu0 %v1079
  %1097 = vmatpush.bf16.msra.mxu0 %v1078
  %1098 = vmatpush.bf16.msra.mxu0 %v1077
  %1099 = vmatpush.bf16.msra.mxu0 %v1076
  %1100 = vmatmul.bf16.gmra.mxu0 %v1025
  %v1101 = vpop.f32.mrf.mxu0
  %v1102 = vadd.f32 0.0, %v1101
  %v1103 = vpop.f32.mrf.mxu0
  %v1104 = vadd.f32 0.0, %v1103
  %1105 = vmatmul.bf16.gmra.mxu0 %v1026
  %v1106 = vpop.f32.mrf.mxu0
  %v1107 = vadd.f32 0.0, %v1106
  %v1108 = vpop.f32.mrf.mxu0
  %v1109 = vadd.f32 0.0, %v1108
  %1110 = vdwg.mxu0
  %v1127 = vunpack.c.l.b16 %v1009
  %v1128 = vunpack.c.l.b16 %v1010
  %v1129 = vunpack.c.l.b16 %v1011
  %v1130 = vunpack.c.l.b16 %v1012
  %v1131 = vunpack.c.l.b16 %v1013
  %v1132 = vunpack.c.l.b16 %v1014
  %v1133 = vunpack.c.l.b16 %v1015
  %v1134 = vunpack.c.l.b16 %v1016
  %v1135 = vunpack.c.l.b16 %v1017
  %v1136 = vunpack.c.l.b16 %v1018
  %v1137 = vunpack.c.l.b16 %v1019
  %v1138 = vunpack.c.l.b16 %v1020
  %v1139 = vunpack.c.l.b16 %v1021
  %v1140 = vunpack.c.l.b16 %v1022
  %v1141 = vunpack.c.l.b16 %v1023
  %v1142 = vunpack.c.l.b16 %v1024
  %v1143 = vpack.c.b16 %v1128, %v1127
  %v1144 = vpack.c.b16 %v1130, %v1129
  %v1145 = vpack.c.b16 %v1132, %v1131
  %v1146 = vpack.c.b16 %v1134, %v1133
  %v1147 = vpack.c.b16 %v1136, %v1135
  %v1148 = vpack.c.b16 %v1138, %v1137
  %v1149 = vpack.c.b16 %v1140, %v1139
  %v1150 = vpack.c.b16 %v1142, %v1141
  %1159 = vmatpush.bf16.msra.mxu0 %v1150
  %1160 = vmatpush.bf16.msra.mxu0 %v1149
  %1161 = vmatpush.bf16.msra.mxu0 %v1148
  %1162 = vmatpush.bf16.msra.mxu0 %v1147
  %1163 = vmatpush.bf16.msra.mxu0 %v1146
  %1164 = vmatpush.bf16.msra.mxu0 %v1145
  %1165 = vmatpush.bf16.msra.mxu0 %v1144
  %1166 = vmatpush.bf16.msra.mxu0 %v1143
  %1167 = vmatmul.bf16.gmra.mxu0 %v1007
  %v1168 = vpop.f32.mrf.mxu0
  %v1169 = vadd.f32 %v1102, %v1168
  %v1170 = vpop.f32.mrf.mxu0
  %v1171 = vadd.f32 %v1104, %v1170
  %1172 = vmatmul.bf16.gmra.mxu0 %v1008
  %v1173 = vpop.f32.mrf.mxu0
  %v1174 = vadd.f32 %v1107, %v1173
  %v1175 = vpop.f32.mrf.mxu0
  %v1176 = vadd.f32 %v1109, %v1175
  %1177 = vdwg.mxu0
  %v1178 = vrot.slane %v991, 1
  %v1179 = vrot.slane %v992, 1
  %v1180 = vrot.slane %v993, 1
  %v1181 = vrot.slane %v994, 1
  %v1182 = vsel %vm698, %v1180, %v1181
  %v1183 = vsel %vm698, %v1179, %v1180
  %v1184 = vsel %vm698, %v1178, %v1179
  %v1185 = vsel %vm698, %v1181, %v1178
  %v1186 = vmul.f32 %v1184, %v707
  %v1187 = vmul.f32 %v1183, %v708
  %v1188 = vmul.f32 %v1182, %v707
  %v1189 = vmul.f32 %v1185, %v708
  %v1190 = vpack.c.bf16 %v1187, %v1186
  %v1191 = vpack.c.bf16 %v1189, %v1188
  %s1192 = scalar_lea.vmem %s4, 128
  %v1193 = vld [vmem:[%s1192] sm:$0xf]
  %v1194 = vld [vmem:[%s1192 + $0x4] sm:$0xf]
  %v1195 = vld [vmem:[%s1192 + $0x8] sm:$0xf]
  %v1196 = vld [vmem:[%s1192 + $0xc] sm:$0xf]
  %v1197 = vld [vmem:[%s1192 + $0x10] sm:$0xf]
  %v1198 = vld [vmem:[%s1192 + $0x14] sm:$0xf]
  %v1199 = vld [vmem:[%s1192 + $0x18] sm:$0xf]
  %v1200 = vld [vmem:[%s1192 + $0x1c] sm:$0xf]
  %v1201 = vld [vmem:[%s1192 + $0x20] sm:$0xf]
  %v1202 = vld [vmem:[%s1192 + $0x24] sm:$0xf]
  %v1203 = vld [vmem:[%s1192 + $0x28] sm:$0xf]
  %v1204 = vld [vmem:[%s1192 + $0x2c] sm:$0xf]
  %v1205 = vld [vmem:[%s1192 + $0x30] sm:$0xf]
  %v1206 = vld [vmem:[%s1192 + $0x34] sm:$0xf]
  %v1207 = vld [vmem:[%s1192 + $0x38] sm:$0xf]
  %v1208 = vld [vmem:[%s1192 + $0x3c] sm:$0xf]
  %v1225 = vunpack.c.l.b16 %v1193
  %v1226 = vunpack.c.l.b16 %v1194
  %v1227 = vunpack.c.l.b16 %v1195
  %v1228 = vunpack.c.l.b16 %v1196
  %v1229 = vunpack.c.l.b16 %v1197
  %v1230 = vunpack.c.l.b16 %v1198
  %v1231 = vunpack.c.l.b16 %v1199
  %v1232 = vunpack.c.l.b16 %v1200
  %v1233 = vunpack.c.l.b16 %v1201
  %v1234 = vunpack.c.l.b16 %v1202
  %v1235 = vunpack.c.l.b16 %v1203
  %v1236 = vunpack.c.l.b16 %v1204
  %v1237 = vunpack.c.l.b16 %v1205
  %v1238 = vunpack.c.l.b16 %v1206
  %v1239 = vunpack.c.l.b16 %v1207
  %v1240 = vunpack.c.l.b16 %v1208
  %v1241 = vpack.c.b16 %v1226, %v1225
  %v1242 = vpack.c.b16 %v1228, %v1227
  %v1243 = vpack.c.b16 %v1230, %v1229
  %v1244 = vpack.c.b16 %v1232, %v1231
  %v1245 = vpack.c.b16 %v1234, %v1233
  %v1246 = vpack.c.b16 %v1236, %v1235
  %v1247 = vpack.c.b16 %v1238, %v1237
  %v1248 = vpack.c.b16 %v1240, %v1239
  %1257 = vmatpush.bf16.msra.mxu0 %v1248
  %1258 = vmatpush.bf16.msra.mxu0 %v1247
  %1259 = vmatpush.bf16.msra.mxu0 %v1246
  %1260 = vmatpush.bf16.msra.mxu0 %v1245
  %1261 = vmatpush.bf16.msra.mxu0 %v1244
  %1262 = vmatpush.bf16.msra.mxu0 %v1243
  %1263 = vmatpush.bf16.msra.mxu0 %v1242
  %1264 = vmatpush.bf16.msra.mxu0 %v1241
  %1265 = vmatmul.bf16.gmra.mxu0 %v1190
  %v1266 = vpop.f32.mrf.mxu0
  %v1267 = vadd.f32 0.0, %v1266
  %v1268 = vpop.f32.mrf.mxu0
  %v1269 = vadd.f32 0.0, %v1268
  %1270 = vmatmul.bf16.gmra.mxu0 %v1191
  %v1271 = vpop.f32.mrf.mxu0
  %v1272 = vadd.f32 0.0, %v1271
  %v1273 = vpop.f32.mrf.mxu0
  %v1274 = vadd.f32 0.0, %v1273
  %1275 = vdwg.mxu0
  %v1276 = vadd.f32 %v1169, %v1267
  %v1277 = vadd.f32 %v1171, %v1269
  %v1278 = vadd.f32 %v1174, %v1272
  %v1279 = vadd.f32 %v1176, %v1274
  %1280 = vmatpush.msra.mxu0 0.0
  %1281 = vmatpush.msra.mxu0 0.0
  %1282 = vmatpush.msra.mxu0 0.0
  %1283 = vmatpush.msra.mxu0 0.0
  %1284 = vmatpush.msra.mxu0 0.0
  %1285 = vmatpush.msra.mxu0 0.0
  %1286 = vmatpush.msra.mxu0 0.0
  %1287 = vmatpush.msra.mxu0 0.0
  %1288 = vmatpush.msra.mxu0 0.0
  %1289 = vmatpush.msra.mxu0 0.0
  %1290 = vmatpush.msra.mxu0 0.0
  %1291 = vmatpush.msra.mxu0 0.0
  %1292 = vmatpush.msra.mxu0 %v1279
  %1293 = vmatpush.msra.mxu0 %v1278
  %1294 = vmatpush.msra.mxu0 %v1277
  %1295 = vmatpush.msra.mxu0 %v1276
  %1296 = vmatmul.f32.gmra.mxu0 %v148
  %v1297 = vpop.f32.mrf.mxu0
  %v1298 = vadd.f32 0.0, %v1297
  %1299 = vdwg.mxu0
  %v1300 = vmul.f32 %v1276, %v1276
  %v1301 = vmul.f32 %v1277, %v1277
  %v1302 = vmul.f32 %v1278, %v1278
  %v1303 = vmul.f32 %v1279, %v1279
  %1304 = vmatpush.msra.mxu0 0.0
  %1305 = vmatpush.msra.mxu0 0.0
  %1306 = vmatpush.msra.mxu0 0.0
  %1307 = vmatpush.msra.mxu0 0.0
  %1308 = vmatpush.msra.mxu0 0.0
  %1309 = vmatpush.msra.mxu0 0.0
  %1310 = vmatpush.msra.mxu0 0.0
  %1311 = vmatpush.msra.mxu0 0.0
  %1312 = vmatpush.msra.mxu0 0.0
  %1313 = vmatpush.msra.mxu0 0.0
  %1314 = vmatpush.msra.mxu0 0.0
  %1315 = vmatpush.msra.mxu0 0.0
  %1316 = vmatpush.msra.mxu0 %v1303
  %1317 = vmatpush.msra.mxu0 %v1302
  %1318 = vmatpush.msra.mxu0 %v1301
  %1319 = vmatpush.msra.mxu0 %v1300
  %1320 = vmatmul.f32.gmra.mxu0 %v148
  %v1321 = vpop.f32.mrf.mxu0
  %v1322 = vadd.f32 0.0, %v1321
  %1323 = vdwg.mxu0
  %v1324 = vmul.f32 %v1298, 0.03125
  %v1325 = vmul.f32 %v1322, 0.03125
  %v1326 = vmul.f32 %v1324, %v1324
  %v1327 = vsub.f32 %v1325, %v1326
  %v1328 = vmax.f32 %v1327, 0.0
  %v1329 = vld [vmem:[%s11] sm:$0x1]
  %v1330 = vadd.f32 %v1328, 1e-05
  %v1331 = vrsqrt.pop %v1330
  %v1332 = vmul.f32 %v1331, %v1330
  %v1333 = vmul.f32 %v1332, %v1331
  %v1334 = vmul.f32 0.5, %v1333
  %v1335 = vsub.f32 1.5, %v1334
  %v1336 = vmul.f32 %v1331, %v1335
  %vm1337 = vweird.f32 %v1330
  %vm1338 = vweird.f32 %v1331
  %vm1339 = vmor %vm1337, %vm1338
  %v1340 = vsel %vm1339, %v1331, %v1336
  %v1341 = vmul.f32 %v1329, %v1340
  %v1342 = vld [vmem:[%s12] sm:$0x1]
  %v1343 = vmul.f32 %v1324, %v1341
  %v1344 = vsub.f32 %v1342, %v1343
  %v1346 = vperm.slane %v1341, 0
  %v1348 = vmul.f32 %v1276, %v1346
  %v1349 = vmul.f32 %v1277, %v1346
  %v1350 = vmul.f32 %v1278, %v1346
  %v1351 = vmul.f32 %v1279, %v1346
  %v1353 = vperm.slane %v1344, 0
  %v1355 = vadd.f32 %v1348, %v1353
  %v1356 = vadd.f32 %v1349, %v1353
  %v1357 = vadd.f32 %v1350, %v1353
  %v1358 = vadd.f32 %v1351, %v1353
  %v1359 = vadd.f32 %v1355, %v391
  %v1360 = vadd.f32 %v1356, %v392
  %v1361 = vadd.f32 %v1357, %v393
  %v1362 = vadd.f32 %v1358, %v394
  %v1363 = vmax.f32 %v1359, 0.0
  %v1364 = vmax.f32 %v1360, 0.0
  %v1365 = vmax.f32 %v1361, 0.0
  %v1366 = vmax.f32 %v1362, 0.0
  %1367 = vst [vmem:[%s13] sm:$0xff] %v1363
  %1368 = vst [vmem:[%s13 + $0x8] sm:$0xff] %v1364
  %1369 = vst [vmem:[%s13 + $0x10] sm:$0xff] %v1365
  %1370 = vst [vmem:[%s13 + $0x18] sm:$0xff] %v1366
  // Predicated region
  $region54: #{resnet_block_forward.1} parent=0 // pred_check
    _
  $region55: #{resnet_block_forward.1} parent=0 // pred_check_branch
    %1372 = sbr.rel (0) target = $region57
  $region56: #{resnet_block_forward.1} parent=0 // pred_region
    _
  $region57: #{resnet_block_forward.1} parent=0 // pred_fallthru
    _
  // Predicated region
  $region58: #{resnet_block_forward.1} parent=0 // pred_check
    _
  $region59: #{resnet_block_forward.1} parent=0 // pred_check_branch
    %1374 = sbr.rel (0) target = $region61
  $region60: #{resnet_block_forward.1} parent=0 // pred_region
    _
  $region61: #{resnet_block_forward.1} parent=0 // pred_fallthru
    _

</llo_original>
